<compile_context>
chip_gen: v7x
topology: tpu7x:2x2x1
jax: 0.10.0
libtpu: 0.0.40
codegen_flags: <defaults>
</compile_context>

<pallas_src>
import math

import jax
import jax.numpy as jnp
import numpy as np
from jax.experimental import pallas as pl
from jax.experimental.pallas import tpu as pltpu

# ---- small config consistent with the module ----
B = 2
SQ = 8            # query sequence length
SKV = 16          # key / value sequence length
QUERY_SIZE = 32
KEY_SIZE = 32
VALUE_SIZE = 32
NUM_HIDDEN = 32
NUM_HEADS = 4
HEAD_DIM = NUM_HIDDEN // NUM_HEADS


# ------------------------- Pallas kernel -------------------------
def _mha_kernel(q_ref, k_ref, v_ref, wq_ref, wk_ref, wv_ref, wo_ref,
                out_ref, oheads_ref):
    # Per-batch blocks: q_ref (1, SQ, Dq), k_ref/v_ref (1, SKV, Dk/Dv).
    xq = q_ref[0]                                   # (SQ,  Dq)
    xk = k_ref[0]                                   # (SKV, Dk)
    xv = v_ref[0]                                   # (SKV, Dv)

    # Linear projections (bias=False). Kept as three matmuls: inputs differ.
    q = jnp.dot(xq, wq_ref[...], preferred_element_type=jnp.float32)   # (SQ,  H)
    k = jnp.dot(xk, wk_ref[...], preferred_element_type=jnp.float32)   # (SKV, H)
    v = jnp.dot(xv, wv_ref[...], preferred_element_type=jnp.float32)   # (SKV, H)

    scale = 1.0 / math.sqrt(HEAD_DIM)

    # Per-head scaled dot-product attention. Each head's output lands in the
    # matching column slice of the VMEM scratch; concat(heads) @ Wo becomes a
    # single matmul afterwards.
    for h in range(NUM_HEADS):
        sl = slice(h * HEAD_DIM, (h + 1) * HEAD_DIM)
        qh, kh, vh = q[:, sl], k[:, sl], v[:, sl]
        s = jax.lax.dot_general(qh, kh, (((1,), (1,)), ((), ())),
                                preferred_element_type=jnp.float32) * scale
        # Hand-rolled softmax; divide replaced by EUP approximate reciprocal.
        m = jnp.max(s, axis=-1, keepdims=True)
        p = jnp.exp(s - m)
        denom = jnp.sum(p, axis=-1, keepdims=True)
        a = p * pl.reciprocal(denom, approx=True)
        # dropout(attn) is identity at inference.
        oheads_ref[:, sl] = jnp.dot(a, vh, preferred_element_type=jnp.float32)

    # Single output projection: (SQ, NUM_HIDDEN) @ (NUM_HIDDEN, NUM_HIDDEN).
    out_ref[0] = jnp.dot(oheads_ref[...], wo_ref[...],
                         preferred_element_type=jnp.float32)


# ------------------------- wrapper -------------------------
@jax.jit
def mha_forward(queries, keys, values, wq, wk, wv, wo):
    b, sq, dq = queries.shape
    _, skv, dk = keys.shape
    dv = values.shape[2]
    nh = wo.shape[0]
    return pl.pallas_call(
        _mha_kernel,
        out_shape=jax.ShapeDtypeStruct((b, sq, nh), jnp.float32),
        grid=(b,),
        in_specs=[
            pl.BlockSpec((1, sq, dq), lambda i: (i, 0, 0)),
            pl.BlockSpec((1, skv, dk), lambda i: (i, 0, 0)),
            pl.BlockSpec((1, skv, dv), lambda i: (i, 0, 0)),
            pl.BlockSpec((dq, nh), lambda i: (0, 0)),
            pl.BlockSpec((dk, nh), lambda i: (0, 0)),
            pl.BlockSpec((dv, nh), lambda i: (0, 0)),
            pl.BlockSpec((nh, nh), lambda i: (0, 0)),
        ],
        out_specs=pl.BlockSpec((1, sq, nh), lambda i: (i, 0, 0)),
        scratch_shapes=[pltpu.VMEM((sq, nh), jnp.float32)],
        compiler_params=pltpu.CompilerParams(
            dimension_semantics=("parallel",)),
    )(queries, keys, values, wq, wk, wv, wo)


# ------------------------- pure-JAX reference -------------------------
def reference_mha(queries, keys, values, wq, wk, wv, wo):
    hp = jax.lax.Precision.HIGHEST
    b, sq, _ = queries.shape

    def proj_split(x, w):
        y = jnp.einsum('bse,eh->bsh', x, w, precision=hp)
        return y.reshape(b, -1, NUM_HEADS, HEAD_DIM).transpose(0, 2, 1, 3)

    qh = proj_split(queries, wq)                    # (B, Hn, Sq,  D)
    kh = proj_split(keys, wk)                       # (B, Hn, Skv, D)
    vh = proj_split(values, wv)                     # (B, Hn, Skv, D)
    s = jnp.einsum('bhqd,bhkd->bhqk', qh, kh, precision=hp) / math.sqrt(HEAD_DIM)
    a = jax.nn.softmax(s, axis=-1)
    o = jnp.einsum('bhqk,bhkd->bhqd', a, vh, precision=hp)
    o = o.transpose(0, 2, 1, 3).reshape(b, sq, NUM_HIDDEN)
    return jnp.einsum('bsh,ho->bso', o, wo, precision=hp)


# ------------------------- main -------------------------
if __name__ == "__main__":
    key = jax.random.PRNGKey(0)
    kq, kk, kv, kwq, kwk, kwv, kwo = jax.random.split(key, 7)

    queries = jax.random.normal(kq, (B, SQ, QUERY_SIZE), jnp.float32)
    keys = jax.random.normal(kk, (B, SKV, KEY_SIZE), jnp.float32)
    values = jax.random.normal(kv, (B, SKV, VALUE_SIZE), jnp.float32)

    # Weights stored as (in_features, out_features): y = x @ W (bias=False).
    wq = 0.1 * jax.random.normal(kwq, (QUERY_SIZE, NUM_HIDDEN), jnp.float32)
    wk = 0.1 * jax.random.normal(kwk, (KEY_SIZE, NUM_HIDDEN), jnp.float32)
    wv = 0.1 * jax.random.normal(kwv, (VALUE_SIZE, NUM_HIDDEN), jnp.float32)
    wo = 0.1 * jax.random.normal(kwo, (NUM_HIDDEN, NUM_HIDDEN), jnp.float32)

    out = mha_forward(queries, keys, values, wq, wk, wv, wo)
    out = jax.block_until_ready(out)

    ref = reference_mha(queries, keys, values, wq, wk, wv, wo)
    np.testing.assert_allclose(np.asarray(out), np.asarray(ref),
                               rtol=5e-3, atol=5e-3)
    assert out.shape == (B, SQ, NUM_HIDDEN)
    print("KERNEL_OK")
</pallas_src>

<mosaic_0001>
module attributes {stable_mosaic.version = 11 : i64} {
  func.func @_mha_kernel(%arg0: i32, %arg1: memref<1x8x32xf32, #tpu.memory_space<vmem>>, %arg2: memref<1x16x32xf32, #tpu.memory_space<vmem>>, %arg3: memref<1x16x32xf32, #tpu.memory_space<vmem>>, %arg4: memref<32x32xf32, #tpu.memory_space<vmem>>, %arg5: memref<32x32xf32, #tpu.memory_space<vmem>>, %arg6: memref<32x32xf32, #tpu.memory_space<vmem>>, %arg7: memref<32x32xf32, #tpu.memory_space<vmem>>, %arg8: memref<1x8x32xf32, #tpu.memory_space<vmem>>, %arg9: memref<8x32xf32, #tpu.memory_space<vmem>>) attributes {dimension_semantics = [#tpu.dimension_semantics<parallel>], iteration_bounds = array<i64: 2>, scalar_prefetch = 0 : i64, scratch_operands = 1 : i64, tpu.core_type = #tpu.core_type<tc>, window_params = [{transform_indices = @transform_0, window_bounds = array<i64: 1, 8, 32>}, {transform_indices = @transform_1, window_bounds = array<i64: 1, 16, 32>}, {transform_indices = @transform_2, window_bounds = array<i64: 1, 16, 32>}, {pipeline_mode = #tpu.pipeline_mode<synchronous>, transform_indices = @transform_3, window_bounds = array<i64: 32, 32>}, {pipeline_mode = #tpu.pipeline_mode<synchronous>, transform_indices = @transform_4, window_bounds = array<i64: 32, 32>}, {pipeline_mode = #tpu.pipeline_mode<synchronous>, transform_indices = @transform_5, window_bounds = array<i64: 32, 32>}, {pipeline_mode = #tpu.pipeline_mode<synchronous>, transform_indices = @transform_6, window_bounds = array<i64: 32, 32>}, {transform_indices = @transform_7, window_bounds = array<i64: 1, 8, 32>}]} {
    %c0 = arith.constant 0 : index
    %c0_0 = arith.constant 0 : index
    %c0_1 = arith.constant 0 : index
    %0 = vector.load %arg1[%c0, %c0_0, %c0_1] : memref<1x8x32xf32, #tpu.memory_space<vmem>>, vector<1x8x32xf32>
    %1 = vector.shape_cast %0 : vector<1x8x32xf32> to vector<8x32xf32>
    %c0_2 = arith.constant 0 : index
    %c0_3 = arith.constant 0 : index
    %c0_4 = arith.constant 0 : index
    %2 = vector.load %arg2[%c0_2, %c0_3, %c0_4] : memref<1x16x32xf32, #tpu.memory_space<vmem>>, vector<1x16x32xf32>
    %3 = vector.shape_cast %2 : vector<1x16x32xf32> to vector<16x32xf32>
    %c0_5 = arith.constant 0 : index
    %c0_6 = arith.constant 0 : index
    %c0_7 = arith.constant 0 : index
    %4 = vector.load %arg3[%c0_5, %c0_6, %c0_7] : memref<1x16x32xf32, #tpu.memory_space<vmem>>, vector<1x16x32xf32>
    %5 = vector.shape_cast %4 : vector<1x16x32xf32> to vector<16x32xf32>
    %c0_8 = arith.constant 0 : index
    %c0_9 = arith.constant 0 : index
    %6 = vector.load %arg4[%c0_8, %c0_9] : memref<32x32xf32, #tpu.memory_space<vmem>>, vector<32x32xf32>
    %cst = arith.constant dense<0.000000e+00> : vector<8x32xf32>
    %7 = tpu.matmul %1, %6, %cst {dimension_numbers = #tpu.dot_dimension_numbers<[1], [0], [0], [1], [0, 0, 1, 1], [], []>} : vector<8x32xf32>, vector<32x32xf32>, vector<8x32xf32> -> vector<8x32xf32>
    %c0_10 = arith.constant 0 : index
    %c0_11 = arith.constant 0 : index
    %8 = vector.load %arg5[%c0_10, %c0_11] : memref<32x32xf32, #tpu.memory_space<vmem>>, vector<32x32xf32>
    %cst_12 = arith.constant dense<0.000000e+00> : vector<16x32xf32>
    %9 = tpu.matmul %3, %8, %cst_12 {dimension_numbers = #tpu.dot_dimension_numbers<[1], [0], [0], [1], [0, 0, 1, 1], [], []>} : vector<16x32xf32>, vector<32x32xf32>, vector<16x32xf32> -> vector<16x32xf32>
    %c0_13 = arith.constant 0 : index
    %c0_14 = arith.constant 0 : index
    %10 = vector.load %arg6[%c0_13, %c0_14] : memref<32x32xf32, #tpu.memory_space<vmem>>, vector<32x32xf32>
    %cst_15 = arith.constant dense<0.000000e+00> : vector<16x32xf32>
    %11 = tpu.matmul %5, %10, %cst_15 {dimension_numbers = #tpu.dot_dimension_numbers<[1], [0], [0], [1], [0, 0, 1, 1], [], []>} : vector<16x32xf32>, vector<32x32xf32>, vector<16x32xf32> -> vector<16x32xf32>
    %12 = vector.extract_strided_slice %7 {offsets = [0, 0], sizes = [8, 8], strides = [1, 1]} : vector<8x32xf32> to vector<8x8xf32>
    %13 = vector.extract_strided_slice %9 {offsets = [0, 0], sizes = [16, 8], strides = [1, 1]} : vector<16x32xf32> to vector<16x8xf32>
    %14 = vector.extract_strided_slice %11 {offsets = [0, 0], sizes = [16, 8], strides = [1, 1]} : vector<16x32xf32> to vector<16x8xf32>
    %cst_16 = arith.constant dense<0.000000e+00> : vector<8x16xf32>
    %15 = tpu.matmul %12, %13, %cst_16 {dimension_numbers = #tpu.dot_dimension_numbers<[1], [1], [0], [0], [0, 0, 1, 0], [], []>} : vector<8x8xf32>, vector<16x8xf32>, vector<8x16xf32> -> vector<8x16xf32>
    %cst_17 = arith.constant 0.353553385 : f32
    %16 = vector.broadcast %cst_17 : f32 to vector<8x16xf32>
    %17 = arith.mulf %15, %16 : vector<8x16xf32>
    %cst_18 = arith.constant dense<0xFF800000> : vector<8xf32>
    %18 = vector.multi_reduction <maximumf>, %17, %cst_18 [1] : vector<8x16xf32> to vector<8xf32>
    %19 = vector.shape_cast %18 : vector<8xf32> to vector<8x1xf32>
    %20 = vector.broadcast %19 : vector<8x1xf32> to vector<8x16xf32>
    %21 = arith.subf %17, %20 : vector<8x16xf32>
    %22 = math.exp %21 : vector<8x16xf32>
    %cst_19 = arith.constant dense<0.000000e+00> : vector<8xf32>
    %23 = vector.multi_reduction <add>, %22, %cst_19 [1] : vector<8x16xf32> to vector<8xf32>
    %24 = vector.shape_cast %23 : vector<8xf32> to vector<8x1xf32>
    %25 = tpu.reciprocal %24 {approx = true} : vector<8x1xf32> -> vector<8x1xf32>
    %26 = vector.broadcast %25 : vector<8x1xf32> to vector<8x16xf32>
    %27 = arith.mulf %22, %26 : vector<8x16xf32>
    %cst_20 = arith.constant dense<0.000000e+00> : vector<8x8xf32>
    %28 = tpu.matmul %27, %14, %cst_20 {dimension_numbers = #tpu.dot_dimension_numbers<[1], [0], [0], [1], [0, 0, 1, 1], [], []>} : vector<8x16xf32>, vector<16x8xf32>, vector<8x8xf32> -> vector<8x8xf32>
    %c0_21 = arith.constant 0 : index
    %c0_22 = arith.constant 0 : index
    %29 = vector.load %arg9[%c0_21, %c0_22] : memref<8x32xf32, #tpu.memory_space<vmem>>, vector<8x8xf32>
    tpu.vector_store %arg9[%c0_21, %c0_22], %28 {strides = array<i32>} : memref<8x32xf32, #tpu.memory_space<vmem>>, vector<8x8xf32>,
    %30 = vector.extract_strided_slice %7 {offsets = [0, 8], sizes = [8, 8], strides = [1, 1]} : vector<8x32xf32> to vector<8x8xf32>
    %31 = vector.extract_strided_slice %9 {offsets = [0, 8], sizes = [16, 8], strides = [1, 1]} : vector<16x32xf32> to vector<16x8xf32>
    %32 = vector.extract_strided_slice %11 {offsets = [0, 8], sizes = [16, 8], strides = [1, 1]} : vector<16x32xf32> to vector<16x8xf32>
    %cst_23 = arith.constant dense<0.000000e+00> : vector<8x16xf32>
    %33 = tpu.matmul %30, %31, %cst_23 {dimension_numbers = #tpu.dot_dimension_numbers<[1], [1], [0], [0], [0, 0, 1, 0], [], []>} : vector<8x8xf32>, vector<16x8xf32>, vector<8x16xf32> -> vector<8x16xf32>
    %cst_24 = arith.constant 0.353553385 : f32
    %34 = vector.broadcast %cst_24 : f32 to vector<8x16xf32>
    %35 = arith.mulf %33, %34 : vector<8x16xf32>
    %cst_25 = arith.constant dense<0xFF800000> : vector<8xf32>
    %36 = vector.multi_reduction <maximumf>, %35, %cst_25 [1] : vector<8x16xf32> to vector<8xf32>
    %37 = vector.shape_cast %36 : vector<8xf32> to vector<8x1xf32>
    %38 = vector.broadcast %37 : vector<8x1xf32> to vector<8x16xf32>
    %39 = arith.subf %35, %38 : vector<8x16xf32>
    %40 = math.exp %39 : vector<8x16xf32>
    %cst_26 = arith.constant dense<0.000000e+00> : vector<8xf32>
    %41 = vector.multi_reduction <add>, %40, %cst_26 [1] : vector<8x16xf32> to vector<8xf32>
    %42 = vector.shape_cast %41 : vector<8xf32> to vector<8x1xf32>
    %43 = tpu.reciprocal %42 {approx = true} : vector<8x1xf32> -> vector<8x1xf32>
    %44 = vector.broadcast %43 : vector<8x1xf32> to vector<8x16xf32>
    %45 = arith.mulf %40, %44 : vector<8x16xf32>
    %cst_27 = arith.constant dense<0.000000e+00> : vector<8x8xf32>
    %46 = tpu.matmul %45, %32, %cst_27 {dimension_numbers = #tpu.dot_dimension_numbers<[1], [0], [0], [1], [0, 0, 1, 1], [], []>} : vector<8x16xf32>, vector<16x8xf32>, vector<8x8xf32> -> vector<8x8xf32>
    %c0_28 = arith.constant 0 : index
    %c8 = arith.constant 8 : index
    %47 = vector.load %arg9[%c0_28, %c8] : memref<8x32xf32, #tpu.memory_space<vmem>>, vector<8x8xf32>
    tpu.vector_store %arg9[%c0_28, %c8], %46 {strides = array<i32>} : memref<8x32xf32, #tpu.memory_space<vmem>>, vector<8x8xf32>,
    %48 = vector.extract_strided_slice %7 {offsets = [0, 16], sizes = [8, 8], strides = [1, 1]} : vector<8x32xf32> to vector<8x8xf32>
    %49 = vector.extract_strided_slice %9 {offsets = [0, 16], sizes = [16, 8], strides = [1, 1]} : vector<16x32xf32> to vector<16x8xf32>
    %50 = vector.extract_strided_slice %11 {offsets = [0, 16], sizes = [16, 8], strides = [1, 1]} : vector<16x32xf32> to vector<16x8xf32>
    %cst_29 = arith.constant dense<0.000000e+00> : vector<8x16xf32>
    %51 = tpu.matmul %48, %49, %cst_29 {dimension_numbers = #tpu.dot_dimension_numbers<[1], [1], [0], [0], [0, 0, 1, 0], [], []>} : vector<8x8xf32>, vector<16x8xf32>, vector<8x16xf32> -> vector<8x16xf32>
    %cst_30 = arith.constant 0.353553385 : f32
    %52 = vector.broadcast %cst_30 : f32 to vector<8x16xf32>
    %53 = arith.mulf %51, %52 : vector<8x16xf32>
    %cst_31 = arith.constant dense<0xFF800000> : vector<8xf32>
    %54 = vector.multi_reduction <maximumf>, %53, %cst_31 [1] : vector<8x16xf32> to vector<8xf32>
    %55 = vector.shape_cast %54 : vector<8xf32> to vector<8x1xf32>
    %56 = vector.broadcast %55 : vector<8x1xf32> to vector<8x16xf32>
    %57 = arith.subf %53, %56 : vector<8x16xf32>
    %58 = math.exp %57 : vector<8x16xf32>
    %cst_32 = arith.constant dense<0.000000e+00> : vector<8xf32>
    %59 = vector.multi_reduction <add>, %58, %cst_32 [1] : vector<8x16xf32> to vector<8xf32>
    %60 = vector.shape_cast %59 : vector<8xf32> to vector<8x1xf32>
    %61 = tpu.reciprocal %60 {approx = true} : vector<8x1xf32> -> vector<8x1xf32>
    %62 = vector.broadcast %61 : vector<8x1xf32> to vector<8x16xf32>
    %63 = arith.mulf %58, %62 : vector<8x16xf32>
    %cst_33 = arith.constant dense<0.000000e+00> : vector<8x8xf32>
    %64 = tpu.matmul %63, %50, %cst_33 {dimension_numbers = #tpu.dot_dimension_numbers<[1], [0], [0], [1], [0, 0, 1, 1], [], []>} : vector<8x16xf32>, vector<16x8xf32>, vector<8x8xf32> -> vector<8x8xf32>
    %c0_34 = arith.constant 0 : index
    %c16 = arith.constant 16 : index
    %65 = vector.load %arg9[%c0_34, %c16] : memref<8x32xf32, #tpu.memory_space<vmem>>, vector<8x8xf32>
    tpu.vector_store %arg9[%c0_34, %c16], %64 {strides = array<i32>} : memref<8x32xf32, #tpu.memory_space<vmem>>, vector<8x8xf32>,
    %66 = vector.extract_strided_slice %7 {offsets = [0, 24], sizes = [8, 8], strides = [1, 1]} : vector<8x32xf32> to vector<8x8xf32>
    %67 = vector.extract_strided_slice %9 {offsets = [0, 24], sizes = [16, 8], strides = [1, 1]} : vector<16x32xf32> to vector<16x8xf32>
    %68 = vector.extract_strided_slice %11 {offsets = [0, 24], sizes = [16, 8], strides = [1, 1]} : vector<16x32xf32> to vector<16x8xf32>
    %cst_35 = arith.constant dense<0.000000e+00> : vector<8x16xf32>
    %69 = tpu.matmul %66, %67, %cst_35 {dimension_numbers = #tpu.dot_dimension_numbers<[1], [1], [0], [0], [0, 0, 1, 0], [], []>} : vector<8x8xf32>, vector<16x8xf32>, vector<8x16xf32> -> vector<8x16xf32>
    %cst_36 = arith.constant 0.353553385 : f32
    %70 = vector.broadcast %cst_36 : f32 to vector<8x16xf32>
    %71 = arith.mulf %69, %70 : vector<8x16xf32>
    %cst_37 = arith.constant dense<0xFF800000> : vector<8xf32>
    %72 = vector.multi_reduction <maximumf>, %71, %cst_37 [1] : vector<8x16xf32> to vector<8xf32>
    %73 = vector.shape_cast %72 : vector<8xf32> to vector<8x1xf32>
    %74 = vector.broadcast %73 : vector<8x1xf32> to vector<8x16xf32>
    %75 = arith.subf %71, %74 : vector<8x16xf32>
    %76 = math.exp %75 : vector<8x16xf32>
    %cst_38 = arith.constant dense<0.000000e+00> : vector<8xf32>
    %77 = vector.multi_reduction <add>, %76, %cst_38 [1] : vector<8x16xf32> to vector<8xf32>
    %78 = vector.shape_cast %77 : vector<8xf32> to vector<8x1xf32>
    %79 = tpu.reciprocal %78 {approx = true} : vector<8x1xf32> -> vector<8x1xf32>
    %80 = vector.broadcast %79 : vector<8x1xf32> to vector<8x16xf32>
    %81 = arith.mulf %76, %80 : vector<8x16xf32>
    %cst_39 = arith.constant dense<0.000000e+00> : vector<8x8xf32>
    %82 = tpu.matmul %81, %68, %cst_39 {dimension_numbers = #tpu.dot_dimension_numbers<[1], [0], [0], [1], [0, 0, 1, 1], [], []>} : vector<8x16xf32>, vector<16x8xf32>, vector<8x8xf32> -> vector<8x8xf32>
    %c0_40 = arith.constant 0 : index
    %c24 = arith.constant 24 : index
    %83 = vector.load %arg9[%c0_40, %c24] : memref<8x32xf32, #tpu.memory_space<vmem>>, vector<8x8xf32>
    tpu.vector_store %arg9[%c0_40, %c24], %82 {strides = array<i32>} : memref<8x32xf32, #tpu.memory_space<vmem>>, vector<8x8xf32>,
    %c0_41 = arith.constant 0 : index
    %c0_42 = arith.constant 0 : index
    %84 = vector.load %arg9[%c0_41, %c0_42] : memref<8x32xf32, #tpu.memory_space<vmem>>, vector<8x32xf32>
    %c0_43 = arith.constant 0 : index
    %c0_44 = arith.constant 0 : index
    %85 = vector.load %arg7[%c0_43, %c0_44] : memref<32x32xf32, #tpu.memory_space<vmem>>, vector<32x32xf32>
    %cst_45 = arith.constant dense<0.000000e+00> : vector<8x32xf32>
    %86 = tpu.matmul %84, %85, %cst_45 {dimension_numbers = #tpu.dot_dimension_numbers<[1], [0], [0], [1], [0, 0, 1, 1], [], []>} : vector<8x32xf32>, vector<32x32xf32>, vector<8x32xf32> -> vector<8x32xf32>
    %c0_46 = arith.constant 0 : index
    %c0_47 = arith.constant 0 : index
    %c0_48 = arith.constant 0 : index
    %87 = vector.load %arg8[%c0_46, %c0_47, %c0_48] : memref<1x8x32xf32, #tpu.memory_space<vmem>>, vector<1x8x32xf32>
    %88 = vector.shape_cast %87 : vector<1x8x32xf32> to vector<8x32xf32>
    %89 = vector.shape_cast %86 : vector<8x32xf32> to vector<1x8x32xf32>
    tpu.vector_store %arg8[%c0_46, %c0_47, %c0_48], %89 {strides = array<i32>} : memref<1x8x32xf32, #tpu.memory_space<vmem>>, vector<1x8x32xf32>,
    return
  }
  func.func @transform_0(%arg0: i32) -> (i32, i32, i32) {
    %c0_i32 = arith.constant 0 : i32
    %c0_i32_0 = arith.constant 0 : i32
    %c0_i32_1 = arith.constant 0 : i32
    return %arg0, %c0_i32, %c0_i32_0 : i32, i32, i32
  }
  func.func @transform_1(%arg0: i32) -> (i32, i32, i32) {
    %c0_i32 = arith.constant 0 : i32
    %c0_i32_0 = arith.constant 0 : i32
    %c0_i32_1 = arith.constant 0 : i32
    return %arg0, %c0_i32, %c0_i32_0 : i32, i32, i32
  }
  func.func @transform_2(%arg0: i32) -> (i32, i32, i32) {
    %c0_i32 = arith.constant 0 : i32
    %c0_i32_0 = arith.constant 0 : i32
    %c0_i32_1 = arith.constant 0 : i32
    return %arg0, %c0_i32, %c0_i32_0 : i32, i32, i32
  }
  func.func @transform_3(%arg0: i32) -> (i32, i32) {
    %c0_i32 = arith.constant 0 : i32
    %c0_i32_0 = arith.constant 0 : i32
    %c0_i32_1 = arith.constant 0 : i32
    return %c0_i32, %c0_i32_0 : i32, i32
  }
  func.func @transform_4(%arg0: i32) -> (i32, i32) {
    %c0_i32 = arith.constant 0 : i32
    %c0_i32_0 = arith.constant 0 : i32
    %c0_i32_1 = arith.constant 0 : i32
    return %c0_i32, %c0_i32_0 : i32, i32
  }
  func.func @transform_5(%arg0: i32) -> (i32, i32) {
    %c0_i32 = arith.constant 0 : i32
    %c0_i32_0 = arith.constant 0 : i32
    %c0_i32_1 = arith.constant 0 : i32
    return %c0_i32, %c0_i32_0 : i32, i32
  }
  func.func @transform_6(%arg0: i32) -> (i32, i32) {
    %c0_i32 = arith.constant 0 : i32
    %c0_i32_0 = arith.constant 0 : i32
    %c0_i32_1 = arith.constant 0 : i32
    return %c0_i32, %c0_i32_0 : i32, i32
  }
  func.func @transform_7(%arg0: i32) -> (i32, i32, i32) {
    %c0_i32 = arith.constant 0 : i32
    %c0_i32_0 = arith.constant 0 : i32
    %c0_i32_1 = arith.constant 0 : i32
    return %arg0, %c0_i32, %c0_i32_0 : i32, i32, i32
  }
}

</mosaic_0001>

<llo_original>
// kernel: mha_forward.1
$region0: #{mha_forward.1}
  #allocation0 [shape = 'u32[]', space=smem, size = 0x4, offset = 0x4, fixed_abs, tag = 'smem constant byte address 0x4 - core index']
  #allocation1 [shape = 'u32[144,128]{1,0:T(1,128)}', space=vmem, size = 0x12000, scoped, tag = 'internal scratch']
  #allocation2 [shape = 'f32[8,32]{1,0:T(8,128)}', space=vmem, size = 0x1000, scoped, tag = 'scratch operand']
  %s0 = inlined_call_operand.hbm [shape: f32[2,8,32], index: 0, kind: input, shape index: {}]
  %s1 = inlined_call_operand.hbm [shape: f32[2,16,32], index: 1, kind: input, shape index: {}]
  %s2 = inlined_call_operand.hbm [shape: f32[2,16,32], index: 2, kind: input, shape index: {}]
  %s3 = inlined_call_operand.hbm [shape: f32[32,32], index: 3, kind: input, shape index: {}]
  %s4 = inlined_call_operand.hbm [shape: f32[32,32], index: 4, kind: input, shape index: {}]
  %s5 = inlined_call_operand.hbm [shape: f32[32,32], index: 5, kind: input, shape index: {}]
  %s6 = inlined_call_operand.hbm [shape: f32[32,32], index: 6, kind: input, shape index: {}]
  %s7 = inlined_call_operand.hbm [shape: f32[2,8,32], index: 7, kind: output, shape index: {}]
  %s8 = sld [smem:[#allocation0]]
  $region89: #{mha_forward.1} parent=0
    _
  %s10 = ssub.s32 1, %s8
  %s11 = scalar_select 0, %s10, %s8
  $region1: #{mha_forward.1} parent=0
    #allocation3 [shape = 'u8[8192]{0}', space=vmem, size = 0x2000, scoped, tag = 'input window, operand 0']
    #allocation4 [shape = 's32[2]{0}', space=sflag, size = 0x8, scoped, tag = 'scoped memory for mha_forward.1']
    #allocation5 [shape = 's32[2]{0}', space=sflag, size = 0x8, scoped, tag = 'scoped memory for mha_forward.1']
    #allocation6 [shape = 'u8[16384]{0}', space=vmem, size = 0x4000, scoped, tag = 'input window, operand 1']
    #allocation7 [shape = 's32[2]{0}', space=sflag, size = 0x8, scoped, tag = 'scoped memory for mha_forward.1']
    #allocation8 [shape = 'u8[16384]{0}', space=vmem, size = 0x4000, scoped, tag = 'input window, operand 2']
    #allocation9 [shape = 'u8[16384]{0}', space=vmem, size = 0x4000, scoped, tag = 'input window, operand 3, single buffered']
    #allocation10 [shape = 's32[1]{0}', space=sflag, size = 0x4, scoped, tag = 'scoped memory for mha_forward.1']
    #allocation11 [shape = 'u8[16384]{0}', space=vmem, size = 0x4000, scoped, tag = 'input window, operand 4, single buffered']
    #allocation12 [shape = 'u8[16384]{0}', space=vmem, size = 0x4000, scoped, tag = 'input window, operand 5, single buffered']
    #allocation13 [shape = 's32[1]{0}', space=sflag, size = 0x4, scoped, tag = 'scoped memory for mha_forward.1']
    #allocation14 [shape = 'u8[16384]{0}', space=vmem, size = 0x4000, scoped, tag = 'input window, operand 6, single buffered']
    #allocation15 [shape = 'u8[8192]{0}', space=vmem, size = 0x2000, scoped, tag = 'output window, operand 0']
    %12 = vsyncpa [#allocation4], 0
    %s13 = scalar_lea.sflag [#allocation4], 1
    %14 = vsyncpa %s13, 0
    %15 = vsyncpa [#allocation7], 0
    %s16 = scalar_lea.sflag [#allocation7], 1
    %17 = vsyncpa %s16, 0
    %18 = vsyncpa [#allocation10], 0
    %19 = vsyncpa [#allocation13], 0
    %20 = vsyncpa [#allocation5], 0
    %s21 = scalar_lea.sflag [#allocation5], 1
    %22 = vsyncpa %s21, 0
    loop: start=0, step=1, limit=4
    $region2: #{mha_forward.1} parent=1 // loop_pre_header
      _
    $region3: #{mha_forward.1} parent=1 // loop_header
      %s24 = sphi 0, %s28
      %p25 = scmp.ge.s32.totalorder %s24, 4
      %s34 = sphi 0, %s36
      %s37 = sphi 0, %s34
      %s38 = sphi 0, %s37
      %s54 = sphi 0, %s38
      %s60 = sphi 0, %s62
      %s63 = sphi 0, %s60
      %s64 = sphi 0, %s63
      %s80 = sphi 0, %s64
      %s86 = sphi 0, %s88
      %s89 = sphi 0, %s86
      %s90 = sphi 0, %s89
      %s106 = sphi 0, %s90
      %s110 = sphi 0, %s110
      %s112 = sphi 0, %s110
      %s113 = sphi 0, %s112
      %s127 = sphi 0, %s113
      %s131 = sphi 0, %s131
      %s133 = sphi 0, %s131
      %s134 = sphi 0, %s133
      %s148 = sphi 0, %s134
      %s152 = sphi 0, %s152
      %s154 = sphi 0, %s152
      %s155 = sphi 0, %s154
      %s169 = sphi 0, %s155
      %s173 = sphi 0, %s173
      %s175 = sphi 0, %s173
      %s176 = sphi 0, %s175
      %s190 = sphi 0, %s176
      %s196 = sphi 0, %s198
      %s199 = sphi 0, %s196
      %s200 = sphi 0, %s199
      %s216 = sphi 0, %s200
    $region4: #{mha_forward.1} parent=1 // loop_header_branch
      %27 = sbr.rel (%p25) target = $region8
    $region5: #{mha_forward.1} parent=1 // loop_body
      %s29 = ssub.s32 %s24, 1
      %s30 = ssub.s32 %s24, 2
      %s31 = sadd.s32 %s24, 1
      %s32 = ssub.s32 %s24, %s31
      %p33 = scmp.eq.s32.totalorder %s32, 0
      %s35 = sadd.s32 %s34, 1
      %s36 = scalar_select %p33, %s34, %s35
      %p39 = pneg %p33
      %p40 = scmp.eq.s32.totalorder %s24, 1
      %p41 = por %p39, %p40
      %p42 = scmp.ne.s32.totalorder %s34, %s37
      %p43 = scmp.eq.s32.totalorder %s24, 0
      %p44 = por %p42, %p43
      %p45 = scmp.ne.s32.totalorder %s34, %s37
      %p46 = scmp.eq.s32.totalorder %s29, 1
      %p47 = por %p45, %p46
      %p48 = scmp.ne.s32.totalorder %s37, %s38
      %p49 = scmp.eq.s32.totalorder %s29, 0
      %p50 = por %p48, %p49
      %p51 = scmp.ne.s32.totalorder %s37, %s38
      %p52 = scmp.eq.s32.totalorder %s30, 1
      %p53 = por %p51, %p52
      %p55 = scmp.ne.s32.totalorder %s38, %s54
      %p56 = scmp.eq.s32.totalorder %s30, 0
      %p57 = por %p55, %p56
      %s58 = ssub.s32 %s24, %s31
      %p59 = scmp.eq.s32.totalorder %s58, 0
      %s61 = sadd.s32 %s60, 1
      %s62 = scalar_select %p59, %s60, %s61
      %p65 = pneg %p59
      %p66 = scmp.eq.s32.totalorder %s24, 1
      %p67 = por %p65, %p66
      %p68 = scmp.ne.s32.totalorder %s60, %s63
      %p69 = scmp.eq.s32.totalorder %s24, 0
      %p70 = por %p68, %p69
      %p71 = scmp.ne.s32.totalorder %s60, %s63
      %p72 = scmp.eq.s32.totalorder %s29, 1
      %p73 = por %p71, %p72
      %p74 = scmp.ne.s32.totalorder %s63, %s64
      %p75 = scmp.eq.s32.totalorder %s29, 0
      %p76 = por %p74, %p75
      %p77 = scmp.ne.s32.totalorder %s63, %s64
      %p78 = scmp.eq.s32.totalorder %s30, 1
      %p79 = por %p77, %p78
      %p81 = scmp.ne.s32.totalorder %s64, %s80
      %p82 = scmp.eq.s32.totalorder %s30, 0
      %p83 = por %p81, %p82
      %s84 = ssub.s32 %s24, %s31
      %p85 = scmp.eq.s32.totalorder %s84, 0
      %s87 = sadd.s32 %s86, 1
      %s88 = scalar_select %p85, %s86, %s87
      %p91 = pneg %p85
      %p92 = scmp.eq.s32.totalorder %s24, 1
      %p93 = por %p91, %p92
      %p94 = scmp.ne.s32.totalorder %s86, %s89
      %p95 = scmp.eq.s32.totalorder %s24, 0
      %p96 = por %p94, %p95
      %p97 = scmp.ne.s32.totalorder %s86, %s89
      %p98 = scmp.eq.s32.totalorder %s29, 1
      %p99 = por %p97, %p98
      %p100 = scmp.ne.s32.totalorder %s89, %s90
      %p101 = scmp.eq.s32.totalorder %s29, 0
      %p102 = por %p100, %p101
      %p103 = scmp.ne.s32.totalorder %s89, %s90
      %p104 = scmp.eq.s32.totalorder %s30, 1
      %p105 = por %p103, %p104
      %p107 = scmp.ne.s32.totalorder %s90, %s106
      %p108 = scmp.eq.s32.totalorder %s30, 0
      %p109 = por %p107, %p108
      %s111 = sadd.s32 %s110, 1
      %p114 = scmp.eq.s32.totalorder %s24, 1
      %p115 = scmp.ne.s32.totalorder %s110, %s112
      %p116 = scmp.eq.s32.totalorder %s24, 0
      %p117 = por %p115, %p116
      %p118 = scmp.ne.s32.totalorder %s110, %s112
      %p119 = scmp.eq.s32.totalorder %s29, 1
      %p120 = por %p118, %p119
      %p121 = scmp.ne.s32.totalorder %s112, %s113
      %p122 = scmp.eq.s32.totalorder %s29, 0
      %p123 = por %p121, %p122
      %p124 = scmp.ne.s32.totalorder %s112, %s113
      %p125 = scmp.eq.s32.totalorder %s30, 1
      %p126 = por %p124, %p125
      %p128 = scmp.ne.s32.totalorder %s113, %s127
      %p129 = scmp.eq.s32.totalorder %s30, 0
      %p130 = por %p128, %p129
      %s132 = sadd.s32 %s131, 1
      %p135 = scmp.eq.s32.totalorder %s24, 1
      %p136 = scmp.ne.s32.totalorder %s131, %s133
      %p137 = scmp.eq.s32.totalorder %s24, 0
      %p138 = por %p136, %p137
      %p139 = scmp.ne.s32.totalorder %s131, %s133
      %p140 = scmp.eq.s32.totalorder %s29, 1
      %p141 = por %p139, %p140
      %p142 = scmp.ne.s32.totalorder %s133, %s134
      %p143 = scmp.eq.s32.totalorder %s29, 0
      %p144 = por %p142, %p143
      %p145 = scmp.ne.s32.totalorder %s133, %s134
      %p146 = scmp.eq.s32.totalorder %s30, 1
      %p147 = por %p145, %p146
      %p149 = scmp.ne.s32.totalorder %s134, %s148
      %p150 = scmp.eq.s32.totalorder %s30, 0
      %p151 = por %p149, %p150
      %s153 = sadd.s32 %s152, 1
      %p156 = scmp.eq.s32.totalorder %s24, 1
      %p157 = scmp.ne.s32.totalorder %s152, %s154
      %p158 = scmp.eq.s32.totalorder %s24, 0
      %p159 = por %p157, %p158
      %p160 = scmp.ne.s32.totalorder %s152, %s154
      %p161 = scmp.eq.s32.totalorder %s29, 1
      %p162 = por %p160, %p161
      %p163 = scmp.ne.s32.totalorder %s154, %s155
      %p164 = scmp.eq.s32.totalorder %s29, 0
      %p165 = por %p163, %p164
      %p166 = scmp.ne.s32.totalorder %s154, %s155
      %p167 = scmp.eq.s32.totalorder %s30, 1
      %p168 = por %p166, %p167
      %p170 = scmp.ne.s32.totalorder %s155, %s169
      %p171 = scmp.eq.s32.totalorder %s30, 0
      %p172 = por %p170, %p171
      %s174 = sadd.s32 %s173, 1
      %p177 = scmp.eq.s32.totalorder %s24, 1
      %p178 = scmp.ne.s32.totalorder %s173, %s175
      %p179 = scmp.eq.s32.totalorder %s24, 0
      %p180 = por %p178, %p179
      %p181 = scmp.ne.s32.totalorder %s173, %s175
      %p182 = scmp.eq.s32.totalorder %s29, 1
      %p183 = por %p181, %p182
      %p184 = scmp.ne.s32.totalorder %s175, %s176
      %p185 = scmp.eq.s32.totalorder %s29, 0
      %p186 = por %p184, %p185
      %p187 = scmp.ne.s32.totalorder %s175, %s176
      %p188 = scmp.eq.s32.totalorder %s30, 1
      %p189 = por %p187, %p188
      %p191 = scmp.ne.s32.totalorder %s176, %s190
      %p192 = scmp.eq.s32.totalorder %s30, 0
      %p193 = por %p191, %p192
      %s194 = ssub.s32 %s24, %s31
      %p195 = scmp.eq.s32.totalorder %s194, 0
      %s197 = sadd.s32 %s196, 1
      %s198 = scalar_select %p195, %s196, %s197
      %p201 = pneg %p195
      %p202 = scmp.eq.s32.totalorder %s24, 1
      %p203 = por %p201, %p202
      %p204 = scmp.ne.s32.totalorder %s196, %s199
      %p205 = scmp.eq.s32.totalorder %s24, 0
      %p206 = por %p204, %p205
      %p207 = scmp.ne.s32.totalorder %s196, %s199
      %p208 = scmp.eq.s32.totalorder %s29, 1
      %p209 = por %p207, %p208
      %p210 = scmp.ne.s32.totalorder %s199, %s200
      %p211 = scmp.eq.s32.totalorder %s29, 0
      %p212 = por %p210, %p211
      %p213 = scmp.ne.s32.totalorder %s199, %s200
      %p214 = scmp.eq.s32.totalorder %s30, 1
      %p215 = por %p213, %p214
      %p217 = scmp.ne.s32.totalorder %s200, %s216
      %p218 = scmp.eq.s32.totalorder %s30, 0
      %p219 = por %p217, %p218
      %p220 = scmp.le.s32.totalorder 1, %s24
      %p221 = scmp.lt.s32.totalorder %s24, 3
      %p222 = pnand %p220, %p221
      %p223 = pneg %p222
      // Predicated region
      $region9: #{mha_forward.1} parent=5 // pred_check
        _
      $region10: #{mha_forward.1} parent=5 // pred_check_branch
        %225 = sbr.rel (%p222) target = $region12
      $region11: #{mha_forward.1} parent=5 // pred_region
        %s226 = ssub.s32 %s24, 1
        // Predicated region
        $region13: #{mha_forward.1} parent=11 // pred_check
          %p227 = pneg %p123
        $region14: #{mha_forward.1} parent=11 // pred_check_branch
          %229 = sbr.rel (%p227) target = $region16
        $region15: #{mha_forward.1} parent=11 // pred_region
          %s231 = ssub.s32 512, 512
          %232 = vsyncadd [#allocation10], %s231
          %s233 = sshll.u32 [#allocation9], 4
          %s234 = int_to_ptr.vmem [resolvable:$true] %s233
          %239 = dma.hbm_to_vmem [thread:$0]  %s3, 512, %s234, [#allocation10], 128, 128, 8
        $region16: #{mha_forward.1} parent=11 // pred_fallthru
          _
        // Predicated region
        $region17: #{mha_forward.1} parent=11 // pred_check
          %p240 = pneg %p144
        $region18: #{mha_forward.1} parent=11 // pred_check_branch
          %242 = sbr.rel (%p240) target = $region20
        $region19: #{mha_forward.1} parent=11 // pred_region
          %s244 = ssub.s32 512, 512
          %245 = vsyncadd [#allocation10], %s244
          %s246 = sshll.u32 [#allocation11], 4
          %s247 = int_to_ptr.vmem [resolvable:$true] %s246
          %252 = dma.hbm_to_vmem [thread:$0]  %s4, 512, %s247, [#allocation10], 128, 128, 8
        $region20: #{mha_forward.1} parent=11 // pred_fallthru
          _
        // Predicated region
        $region21: #{mha_forward.1} parent=11 // pred_check
          %p253 = pneg %p165
        $region22: #{mha_forward.1} parent=11 // pred_check_branch
          %255 = sbr.rel (%p253) target = $region24
        $region23: #{mha_forward.1} parent=11 // pred_region
          %s257 = ssub.s32 512, 512
          %258 = vsyncadd [#allocation13], %s257
          %s259 = sshll.u32 [#allocation12], 4
          %s260 = int_to_ptr.vmem [resolvable:$true] %s259
          %265 = dma.hbm_to_vmem [thread:$0]  %s5, 512, %s260, [#allocation13], 128, 128, 8
        $region24: #{mha_forward.1} parent=11 // pred_fallthru
          _
        // Predicated region
        $region25: #{mha_forward.1} parent=11 // pred_check
          %p266 = pneg %p186
        $region26: #{mha_forward.1} parent=11 // pred_check_branch
          %268 = sbr.rel (%p266) target = $region28
        $region27: #{mha_forward.1} parent=11 // pred_region
          %s270 = ssub.s32 512, 512
          %271 = vsyncadd [#allocation13], %s270
          %s272 = sshll.u32 [#allocation14], 4
          %s273 = int_to_ptr.vmem [resolvable:$true] %s272
          %278 = dma.hbm_to_vmem [thread:$0]  %s6, 512, %s273, [#allocation13], 128, 128, 8
        $region28: #{mha_forward.1} parent=11 // pred_fallthru
          _
      $region12: #{mha_forward.1} parent=5 // pred_fallthru
        _
      %p279 = scmp.lt.s32.totalorder %s24, 2
      // Predicated region
      $region29: #{mha_forward.1} parent=5 // pred_check
        %p280 = pneg %p279
      $region30: #{mha_forward.1} parent=5 // pred_check_branch
        %282 = sbr.rel (%p280) target = $region32
      $region31: #{mha_forward.1} parent=5 // pred_region
        // Predicated region
        $region33: #{mha_forward.1} parent=31 // pred_check
          %p283 = pneg %p44
        $region34: #{mha_forward.1} parent=31 // pred_check_branch
          %285 = sbr.rel (%p283) target = $region36
        $region35: #{mha_forward.1} parent=31 // pred_region
          %s286 = sand.u32 %s34, 1
          %s287 = scalar_lea.sflag [#allocation4], %s286
          %s288 = sand.u32 %s34, 1
          %s289 = smul.addr %s288, 8
          %s290 = scalar_lea.vmem [#allocation3], %s289
          %s292 = ssub.s32 128, 128
          %293 = vsyncadd %s287, %s292
          %s294 = smul.addr %s24, 128
          %s295 = scalar_lea.hbm %s0, %s294
          %s297 = sshll.u32 %s290, 4
          %s298 = int_to_ptr.vmem [resolvable:$true] %s297
          %300 = dma.hbm_to_vmem [thread:$0]  %s295, 128, %s298, %s287
        $region36: #{mha_forward.1} parent=31 // pred_fallthru
          _
        // Predicated region
        $region37: #{mha_forward.1} parent=31 // pred_check
          %p301 = pneg %p70
        $region38: #{mha_forward.1} parent=31 // pred_check_branch
          %303 = sbr.rel (%p301) target = $region40
        $region39: #{mha_forward.1} parent=31 // pred_region
          %s304 = sand.u32 %s24, 1
          %s305 = scalar_lea.sflag [#allocation7], %s304
          %s306 = sand.u32 %s60, 1
          %s307 = smul.addr %s306, 16
          %s308 = scalar_lea.vmem [#allocation6], %s307
          %s310 = ssub.s32 256, 256
          %311 = vsyncadd %s305, %s310
          %s312 = smul.addr %s24, 2
          %s313 = smul.addr %s312, 128
          %s314 = scalar_lea.hbm %s1, %s313
          %s315 = sshll.u32 %s308, 4
          %s316 = int_to_ptr.vmem [resolvable:$true] %s315
          %321 = dma.hbm_to_vmem [thread:$0]  %s314, 256, %s316, %s305, 128, 128, 8
        $region40: #{mha_forward.1} parent=31 // pred_fallthru
          _
        // Predicated region
        $region41: #{mha_forward.1} parent=31 // pred_check
          %p322 = pneg %p96
        $region42: #{mha_forward.1} parent=31 // pred_check_branch
          %324 = sbr.rel (%p322) target = $region44
        $region43: #{mha_forward.1} parent=31 // pred_region
          %s325 = sand.u32 %s24, 1
          %s326 = scalar_lea.sflag [#allocation7], %s325
          %s327 = sand.u32 %s86, 1
          %s328 = smul.addr %s327, 16
          %s329 = scalar_lea.vmem [#allocation8], %s328
          %s331 = ssub.s32 256, 256
          %332 = vsyncadd %s326, %s331
          %s333 = smul.addr %s24, 2
          %s334 = smul.addr %s333, 128
          %s335 = scalar_lea.hbm %s2, %s334
          %s336 = sshll.u32 %s329, 4
          %s337 = int_to_ptr.vmem [resolvable:$true] %s336
          %342 = dma.hbm_to_vmem [thread:$0]  %s335, 256, %s337, %s326, 128, 128, 8
        $region44: #{mha_forward.1} parent=31 // pred_fallthru
          _
      $region32: #{mha_forward.1} parent=5 // pred_fallthru
        _
      %p343 = scmp.le.s32.totalorder 1, %s24
      %p344 = scmp.lt.s32.totalorder %s24, 3
      %p345 = pnand %p343, %p344
      %p346 = pneg %p345
      // Predicated region
      $region45: #{mha_forward.1} parent=5 // pred_check
        _
      $region46: #{mha_forward.1} parent=5 // pred_check_branch
        %348 = sbr.rel (%p345) target = $region48
      $region47: #{mha_forward.1} parent=5 // pred_region
        %s349 = ssub.s32 %s24, 1
        %s350 = sand.u32 %s37, 1
        %s351 = scalar_lea.sflag [#allocation4], %s350
        %s352 = sand.u32 %s37, 1
        %s353 = smul.addr %s352, 8
        %s354 = scalar_lea.vmem [#allocation3], %s353
        // Predicated region
        $region49: #{mha_forward.1} parent=47 // pred_check
          %p355 = pneg %p50
        $region50: #{mha_forward.1} parent=47 // pred_check_branch
          %357 = sbr.rel (%p355) target = $region52
        $region51: #{mha_forward.1} parent=47 // pred_region
          %358 = dma.done %s351, 128
        $region52: #{mha_forward.1} parent=47 // pred_fallthru
          _
        %s359 = sand.u32 %s29, 1
        %s360 = scalar_lea.sflag [#allocation7], %s359
        %s361 = sand.u32 %s63, 1
        %s362 = smul.addr %s361, 16
        %s363 = scalar_lea.vmem [#allocation6], %s362
        // Predicated region
        $region53: #{mha_forward.1} parent=47 // pred_check
          %p364 = pneg %p76
        $region54: #{mha_forward.1} parent=47 // pred_check_branch
          %366 = sbr.rel (%p364) target = $region56
        $region55: #{mha_forward.1} parent=47 // pred_region
          %367 = dma.done %s360, 256
        $region56: #{mha_forward.1} parent=47 // pred_fallthru
          _
        %s368 = sand.u32 %s29, 1
        %s369 = scalar_lea.sflag [#allocation7], %s368
        %s370 = sand.u32 %s89, 1
        %s371 = smul.addr %s370, 16
        %s372 = scalar_lea.vmem [#allocation8], %s371
        // Predicated region
        $region57: #{mha_forward.1} parent=47 // pred_check
          %p373 = pneg %p102
        $region58: #{mha_forward.1} parent=47 // pred_check_branch
          %375 = sbr.rel (%p373) target = $region60
        $region59: #{mha_forward.1} parent=47 // pred_region
          %376 = dma.done %s369, 256
        $region60: #{mha_forward.1} parent=47 // pred_fallthru
          _
        // Predicated region
        $region61: #{mha_forward.1} parent=47 // pred_check
          %p377 = pneg %p123
        $region62: #{mha_forward.1} parent=47 // pred_check_branch
          %379 = sbr.rel (%p377) target = $region64
        $region63: #{mha_forward.1} parent=47 // pred_region
          %380 = dma.done [#allocation10], 512
        $region64: #{mha_forward.1} parent=47 // pred_fallthru
          _
        // Predicated region
        $region65: #{mha_forward.1} parent=47 // pred_check
          %p381 = pneg %p144
        $region66: #{mha_forward.1} parent=47 // pred_check_branch
          %383 = sbr.rel (%p381) target = $region68
        $region67: #{mha_forward.1} parent=47 // pred_region
          %384 = dma.done [#allocation10], 512
        $region68: #{mha_forward.1} parent=47 // pred_fallthru
          _
        // Predicated region
        $region69: #{mha_forward.1} parent=47 // pred_check
          %p385 = pneg %p165
        $region70: #{mha_forward.1} parent=47 // pred_check_branch
          %387 = sbr.rel (%p385) target = $region72
        $region71: #{mha_forward.1} parent=47 // pred_region
          %388 = dma.done [#allocation13], 512
        $region72: #{mha_forward.1} parent=47 // pred_fallthru
          _
        // Predicated region
        $region73: #{mha_forward.1} parent=47 // pred_check
          %p389 = pneg %p186
        $region74: #{mha_forward.1} parent=47 // pred_check_branch
          %391 = sbr.rel (%p389) target = $region76
        $region75: #{mha_forward.1} parent=47 // pred_region
          %392 = dma.done [#allocation13], 512
        $region76: #{mha_forward.1} parent=47 // pred_fallthru
          _
        %s393 = sand.u32 %s37, 1
        %s394 = scalar_lea.sflag [#allocation4], %s393
        %s395 = sand.u32 %s37, 1
        %s396 = smul.addr %s395, 8
        %s397 = scalar_lea.vmem [#allocation3], %s396
        %p398 = pneg %p50
        %p399 = pneg %p47
        %s400 = sand.u32 %s29, 1
        %s401 = scalar_lea.sflag [#allocation7], %s400
        %s402 = sand.u32 %s63, 1
        %s403 = smul.addr %s402, 16
        %s404 = scalar_lea.vmem [#allocation6], %s403
        %p405 = pneg %p76
        %p406 = pneg %p73
        %s407 = sand.u32 %s29, 1
        %s408 = scalar_lea.sflag [#allocation7], %s407
        %s409 = sand.u32 %s89, 1
        %s410 = smul.addr %s409, 16
        %s411 = scalar_lea.vmem [#allocation8], %s410
        %p412 = pneg %p102
        %p413 = pneg %p99
        %p414 = pneg %p123
        %p415 = pneg %p120
        %p416 = pneg %p144
        %p417 = pneg %p141
        %p418 = pneg %p165
        %p419 = pneg %p162
        %p420 = pneg %p186
        %p421 = pneg %p183
        %p422 = pneg %p212
        %p423 = pneg %p209
        %s424 = sand.u32 %s199, 1
        %s425 = scalar_lea.sflag [#allocation5], %s424
        %s426 = sand.u32 %s199, 1
        %s427 = smul.addr %s426, 8
        %s428 = scalar_lea.vmem [#allocation15], %s427
        %v429 = vld [vmem:[%s354] sm:$0xff]
        %v430 = vld [vmem:[%s363] sm:$0xff]
        %v431 = vld [vmem:[%s363 + $0x8] sm:$0xff]
        %v432 = vld [vmem:[%s372] sm:$0xff]
        %v433 = vld [vmem:[%s372 + $0x8] sm:$0xff]
        %v434 = vld [vmem:[#allocation9] sm:$0xff]
        %v435 = vld [vmem:[#allocation9 + $0x8] sm:$0xff]
        %v436 = vld [vmem:[#allocation9 + $0x10] sm:$0xff]
        %v437 = vld [vmem:[#allocation9 + $0x18] sm:$0xff]
        %vm438 = vcmask 261120
        %v440 = vsel %vm438, %v429, 0
        %442 = vmatprep.subr.mxu0 0.0
        %443 = vmatpush1.msra.mxu0 %v434
        %444 = vmatprep.subr.mxu0 0.0
        %445 = vmatpush1.msra.mxu0 %v435
        %446 = vmatprep.subr.mxu0 0.0
        %447 = vmatpush1.msra.mxu0 %v436
        %448 = vmatprep.subr.mxu0 0.0
        %449 = vmatpush1.msra.mxu0 %v437
        %450 = vmatprep.subr.mxu0 0.0
        %451 = vmatpush1.msra.mxu0 0.0
        %452 = vmatprep.subr.mxu0 0.0
        %453 = vmatpush1.msra.mxu0 0.0
        %454 = vmatprep.subr.mxu0 0.0
        %455 = vmatpush1.msra.mxu0 0.0
        %456 = vmatprep.subr.mxu0 0.0
        %457 = vmatpush1.msra.mxu0 0.0
        %458 = vmatprep.subr.mxu0 0.0
        %459 = vmatpush1.msra.mxu0 0.0
        %460 = vmatprep.subr.mxu0 0.0
        %461 = vmatpush1.msra.mxu0 0.0
        %462 = vmatprep.subr.mxu0 0.0
        %463 = vmatpush1.msra.mxu0 0.0
        %464 = vmatprep.subr.mxu0 0.0
        %465 = vmatpush1.msra.mxu0 0.0
        %466 = vmatprep.subr.mxu0 0.0
        %467 = vmatpush1.msra.mxu0 0.0
        %468 = vmatprep.subr.mxu0 0.0
        %469 = vmatpush1.msra.mxu0 0.0
        %470 = vmatprep.subr.mxu0 0.0
        %471 = vmatpush1.msra.mxu0 0.0
        %472 = vmatprep.subr.mxu0 0.0
        %473 = vmatpush1.msra.mxu0 0.0
        %474 = vmatprep.subr.mxu0 0.0
        %475 = vmatpush1.msra.mxu0 0.0
        %476 = vmatprep.subr.mxu0 0.0
        %477 = vmatpush1.msra.mxu0 0.0
        %478 = vmatprep.subr.mxu0 0.0
        %479 = vmatpush1.msra.mxu0 0.0
        %480 = vmatprep.subr.mxu0 0.0
        %481 = vmatpush1.msra.mxu0 0.0
        %482 = vmatprep.subr.mxu0 0.0
        %483 = vmatpush1.msra.mxu0 0.0
        %484 = vmatprep.subr.mxu0 0.0
        %485 = vmatpush1.msra.mxu0 0.0
        %486 = vmatprep.subr.mxu0 0.0
        %487 = vmatpush1.msra.mxu0 0.0
        %488 = vmatprep.subr.mxu0 0.0
        %489 = vmatpush1.msra.mxu0 0.0
        %490 = vmatprep.subr.mxu0 0.0
        %491 = vmatpush1.msra.mxu0 0.0
        %492 = vmatprep.subr.mxu0 0.0
        %493 = vmatpush1.msra.mxu0 0.0
        %494 = vmatprep.subr.mxu0 0.0
        %495 = vmatpush1.msra.mxu0 0.0
        %496 = vmatprep.subr.mxu0 0.0
        %497 = vmatpush1.msra.mxu0 0.0
        %498 = vmatprep.subr.mxu0 0.0
        %499 = vmatpush1.msra.mxu0 0.0
        %500 = vmatprep.subr.mxu0 0.0
        %501 = vmatpush1.msra.mxu0 0.0
        %502 = vmatprep.subr.mxu0 0.0
        %503 = vmatpush1.msra.mxu0 0.0
        %504 = vmatprep.subr.mxu0 0.0
        %505 = vmatpush1.msra.mxu0 0.0
        %506 = vmatprep.mubr.f32.mxu0 0.0
        %507 = vmatmul.mubr.f32.gmra.mrb[0].mxu0 %v440
        %v508 = vpop.f32.mrb[0].mxu0
        %v509 = vadd.f32 0.0, %v508
        %v510 = vpop.f32.mrb[0].mxu0
        %511 = vdwg.mxu0
        %v512 = vld [vmem:[#allocation11] sm:$0xff]
        %v513 = vld [vmem:[#allocation11 + $0x8] sm:$0xff]
        %v514 = vld [vmem:[#allocation11 + $0x10] sm:$0xff]
        %v515 = vld [vmem:[#allocation11 + $0x18] sm:$0xff]
        %v517 = vsel %vm438, %v430, 0
        %v520 = vsel %vm438, %v431, 0
        %522 = vmatprep.subr.mxu0 0.0
        %523 = vmatpush1.msra.mxu0 %v512
        %524 = vmatprep.subr.mxu0 0.0
        %525 = vmatpush1.msra.mxu0 %v513
        %526 = vmatprep.subr.mxu0 0.0
        %527 = vmatpush1.msra.mxu0 %v514
        %528 = vmatprep.subr.mxu0 0.0
        %529 = vmatpush1.msra.mxu0 %v515
        %530 = vmatprep.subr.mxu0 0.0
        %531 = vmatpush1.msra.mxu0 0.0
        %532 = vmatprep.subr.mxu0 0.0
        %533 = vmatpush1.msra.mxu0 0.0
        %534 = vmatprep.subr.mxu0 0.0
        %535 = vmatpush1.msra.mxu0 0.0
        %536 = vmatprep.subr.mxu0 0.0
        %537 = vmatpush1.msra.mxu0 0.0
        %538 = vmatprep.subr.mxu0 0.0
        %539 = vmatpush1.msra.mxu0 0.0
        %540 = vmatprep.subr.mxu0 0.0
        %541 = vmatpush1.msra.mxu0 0.0
        %542 = vmatprep.subr.mxu0 0.0
        %543 = vmatpush1.msra.mxu0 0.0
        %544 = vmatprep.subr.mxu0 0.0
        %545 = vmatpush1.msra.mxu0 0.0
        %546 = vmatprep.subr.mxu0 0.0
        %547 = vmatpush1.msra.mxu0 0.0
        %548 = vmatprep.subr.mxu0 0.0
        %549 = vmatpush1.msra.mxu0 0.0
        %550 = vmatprep.subr.mxu0 0.0
        %551 = vmatpush1.msra.mxu0 0.0
        %552 = vmatprep.subr.mxu0 0.0
        %553 = vmatpush1.msra.mxu0 0.0
        %554 = vmatprep.subr.mxu0 0.0
        %555 = vmatpush1.msra.mxu0 0.0
        %556 = vmatprep.subr.mxu0 0.0
        %557 = vmatpush1.msra.mxu0 0.0
        %558 = vmatprep.subr.mxu0 0.0
        %559 = vmatpush1.msra.mxu0 0.0
        %560 = vmatprep.subr.mxu0 0.0
        %561 = vmatpush1.msra.mxu0 0.0
        %562 = vmatprep.subr.mxu0 0.0
        %563 = vmatpush1.msra.mxu0 0.0
        %564 = vmatprep.subr.mxu0 0.0
        %565 = vmatpush1.msra.mxu0 0.0
        %566 = vmatprep.subr.mxu0 0.0
        %567 = vmatpush1.msra.mxu0 0.0
        %568 = vmatprep.subr.mxu0 0.0
        %569 = vmatpush1.msra.mxu0 0.0
        %570 = vmatprep.subr.mxu0 0.0
        %571 = vmatpush1.msra.mxu0 0.0
        %572 = vmatprep.subr.mxu0 0.0
        %573 = vmatpush1.msra.mxu0 0.0
        %574 = vmatprep.subr.mxu0 0.0
        %575 = vmatpush1.msra.mxu0 0.0
        %576 = vmatprep.subr.mxu0 0.0
        %577 = vmatpush1.msra.mxu0 0.0
        %578 = vmatprep.subr.mxu0 0.0
        %579 = vmatpush1.msra.mxu0 0.0
        %580 = vmatprep.subr.mxu0 0.0
        %581 = vmatpush1.msra.mxu0 0.0
        %582 = vmatprep.subr.mxu0 0.0
        %583 = vmatpush1.msra.mxu0 0.0
        %584 = vmatprep.subr.mxu0 0.0
        %585 = vmatpush1.msra.mxu0 0.0
        %586 = vmatprep.mubr.f32.mxu0 0.0
        %587 = vmatmul.mubr.f32.gmra.mrb[0].mxu0 %v517
        %v588 = vpop.f32.mrb[0].mxu0
        %v589 = vadd.f32 0.0, %v588
        %v590 = vpop.f32.mrb[0].mxu0
        %591 = vmatprep.mubr.f32.mxu0 0.0
        %592 = vmatmul.mubr.f32.gmra.mrb[0].mxu0 %v520
        %v593 = vpop.f32.mrb[0].mxu0
        %v594 = vadd.f32 0.0, %v593
        %v595 = vpop.f32.mrb[0].mxu0
        %596 = vdwg.mxu0
        %v597 = vld [vmem:[#allocation12] sm:$0xff]
        %v598 = vld [vmem:[#allocation12 + $0x8] sm:$0xff]
        %v599 = vld [vmem:[#allocation12 + $0x10] sm:$0xff]
        %v600 = vld [vmem:[#allocation12 + $0x18] sm:$0xff]
        %v602 = vsel %vm438, %v432, 0
        %v605 = vsel %vm438, %v433, 0
        %607 = vmatprep.subr.mxu0 0.0
        %608 = vmatpush1.msra.mxu0 %v597
        %609 = vmatprep.subr.mxu0 0.0
        %610 = vmatpush1.msra.mxu0 %v598
        %611 = vmatprep.subr.mxu0 0.0
        %612 = vmatpush1.msra.mxu0 %v599
        %613 = vmatprep.subr.mxu0 0.0
        %614 = vmatpush1.msra.mxu0 %v600
        %615 = vmatprep.subr.mxu0 0.0
        %616 = vmatpush1.msra.mxu0 0.0
        %617 = vmatprep.subr.mxu0 0.0
        %618 = vmatpush1.msra.mxu0 0.0
        %619 = vmatprep.subr.mxu0 0.0
        %620 = vmatpush1.msra.mxu0 0.0
        %621 = vmatprep.subr.mxu0 0.0
        %622 = vmatpush1.msra.mxu0 0.0
        %623 = vmatprep.subr.mxu0 0.0
        %624 = vmatpush1.msra.mxu0 0.0
        %625 = vmatprep.subr.mxu0 0.0
        %626 = vmatpush1.msra.mxu0 0.0
        %627 = vmatprep.subr.mxu0 0.0
        %628 = vmatpush1.msra.mxu0 0.0
        %629 = vmatprep.subr.mxu0 0.0
        %630 = vmatpush1.msra.mxu0 0.0
        %631 = vmatprep.subr.mxu0 0.0
        %632 = vmatpush1.msra.mxu0 0.0
        %633 = vmatprep.subr.mxu0 0.0
        %634 = vmatpush1.msra.mxu0 0.0
        %635 = vmatprep.subr.mxu0 0.0
        %636 = vmatpush1.msra.mxu0 0.0
        %637 = vmatprep.subr.mxu0 0.0
        %638 = vmatpush1.msra.mxu0 0.0
        %639 = vmatprep.subr.mxu0 0.0
        %640 = vmatpush1.msra.mxu0 0.0
        %641 = vmatprep.subr.mxu0 0.0
        %642 = vmatpush1.msra.mxu0 0.0
        %643 = vmatprep.subr.mxu0 0.0
        %644 = vmatpush1.msra.mxu0 0.0
        %645 = vmatprep.subr.mxu0 0.0
        %646 = vmatpush1.msra.mxu0 0.0
        %647 = vmatprep.subr.mxu0 0.0
        %648 = vmatpush1.msra.mxu0 0.0
        %649 = vmatprep.subr.mxu0 0.0
        %650 = vmatpush1.msra.mxu0 0.0
        %651 = vmatprep.subr.mxu0 0.0
        %652 = vmatpush1.msra.mxu0 0.0
        %653 = vmatprep.subr.mxu0 0.0
        %654 = vmatpush1.msra.mxu0 0.0
        %655 = vmatprep.subr.mxu0 0.0
        %656 = vmatpush1.msra.mxu0 0.0
        %657 = vmatprep.subr.mxu0 0.0
        %658 = vmatpush1.msra.mxu0 0.0
        %659 = vmatprep.subr.mxu0 0.0
        %660 = vmatpush1.msra.mxu0 0.0
        %661 = vmatprep.subr.mxu0 0.0
        %662 = vmatpush1.msra.mxu0 0.0
        %663 = vmatprep.subr.mxu0 0.0
        %664 = vmatpush1.msra.mxu0 0.0
        %665 = vmatprep.subr.mxu0 0.0
        %666 = vmatpush1.msra.mxu0 0.0
        %667 = vmatprep.subr.mxu0 0.0
        %668 = vmatpush1.msra.mxu0 0.0
        %669 = vmatprep.subr.mxu0 0.0
        %670 = vmatpush1.msra.mxu0 0.0
        %671 = vmatprep.mubr.f32.mxu0 0.0
        %672 = vmatmul.mubr.f32.gmra.mrb[0].mxu0 %v602
        %v673 = vpop.f32.mrb[0].mxu0
        %v674 = vadd.f32 0.0, %v673
        %v675 = vpop.f32.mrb[0].mxu0
        %676 = vmatprep.mubr.f32.mxu0 0.0
        %677 = vmatmul.mubr.f32.gmra.mrb[0].mxu0 %v605
        %v678 = vpop.f32.mrb[0].mxu0
        %v679 = vadd.f32 0.0, %v678
        %v680 = vpop.f32.mrb[0].mxu0
        %681 = vdwg.mxu0
        %vm682 = vcmask 64512
        %v684 = vsel %vm682, %v509, 0
        %v687 = vsel %vm682, %v589, 0
        %v690 = vsel %vm682, %v594, 0
        %692 = vmatprep.subr.mxu0 0.0
        %693 = vmatpush1.xpose.msra.mxu0 %v687
        %694 = vmatprep.subr.mxu0 0.0
        %695 = vmatpush1.xpose.msra.mxu0 %v690
        %696 = vmatprep.subr.mxu0 0.0
        %697 = vmatpush1.xpose.msra.mxu0 0.0
        %698 = vmatprep.subr.mxu0 0.0
        %699 = vmatpush1.xpose.msra.mxu0 0.0
        %700 = vmatprep.subr.mxu0 0.0
        %701 = vmatpush1.xpose.msra.mxu0 0.0
        %702 = vmatprep.subr.mxu0 0.0
        %703 = vmatpush1.xpose.msra.mxu0 0.0
        %704 = vmatprep.subr.mxu0 0.0
        %705 = vmatpush1.xpose.msra.mxu0 0.0
        %706 = vmatprep.subr.mxu0 0.0
        %707 = vmatpush1.xpose.msra.mxu0 0.0
        %708 = vmatprep.subr.mxu0 0.0
        %709 = vmatpush1.xpose.msra.mxu0 0.0
        %710 = vmatprep.subr.mxu0 0.0
        %711 = vmatpush1.xpose.msra.mxu0 0.0
        %712 = vmatprep.subr.mxu0 0.0
        %713 = vmatpush1.xpose.msra.mxu0 0.0
        %714 = vmatprep.subr.mxu0 0.0
        %715 = vmatpush1.xpose.msra.mxu0 0.0
        %716 = vmatprep.subr.mxu0 0.0
        %717 = vmatpush1.xpose.msra.mxu0 0.0
        %718 = vmatprep.subr.mxu0 0.0
        %719 = vmatpush1.xpose.msra.mxu0 0.0
        %720 = vmatprep.subr.mxu0 0.0
        %721 = vmatpush1.xpose.msra.mxu0 0.0
        %722 = vmatprep.subr.mxu0 0.0
        %723 = vmatpush1.xpose.msra.mxu0 0.0
        %724 = vmatprep.subr.mxu0 0.0
        %725 = vmatpush1.xpose.msra.mxu0 0.0
        %726 = vmatprep.subr.mxu0 0.0
        %727 = vmatpush1.xpose.msra.mxu0 0.0
        %728 = vmatprep.subr.mxu0 0.0
        %729 = vmatpush1.xpose.msra.mxu0 0.0
        %730 = vmatprep.subr.mxu0 0.0
        %731 = vmatpush1.xpose.msra.mxu0 0.0
        %732 = vmatprep.subr.mxu0 0.0
        %733 = vmatpush1.xpose.msra.mxu0 0.0
        %734 = vmatprep.subr.mxu0 0.0
        %735 = vmatpush1.xpose.msra.mxu0 0.0
        %736 = vmatprep.subr.mxu0 0.0
        %737 = vmatpush1.xpose.msra.mxu0 0.0
        %738 = vmatprep.subr.mxu0 0.0
        %739 = vmatpush1.xpose.msra.mxu0 0.0
        %740 = vmatprep.subr.mxu0 0.0
        %741 = vmatpush1.xpose.msra.mxu0 0.0
        %742 = vmatprep.subr.mxu0 0.0
        %743 = vmatpush1.xpose.msra.mxu0 0.0
        %744 = vmatprep.subr.mxu0 0.0
        %745 = vmatpush1.xpose.msra.mxu0 0.0
        %746 = vmatprep.subr.mxu0 0.0
        %747 = vmatpush1.xpose.msra.mxu0 0.0
        %748 = vmatprep.subr.mxu0 0.0
        %749 = vmatpush1.xpose.msra.mxu0 0.0
        %750 = vmatprep.subr.mxu0 0.0
        %751 = vmatpush1.xpose.msra.mxu0 0.0
        %752 = vmatprep.subr.mxu0 0.0
        %753 = vmatpush1.xpose.msra.mxu0 0.0
        %754 = vmatprep.subr.mxu0 0.0
        %755 = vmatpush1.xpose.msra.mxu0 0.0
        %756 = vmatprep.mubr.f32.mxu0 0.0
        %757 = vmatmul.mubr.f32.gmra.mrb[0].mxu0 %v684
        %v758 = vpop.f32.mrb[0].mxu0
        %v759 = vadd.f32 0.0, %v758
        %v760 = vpop.f32.mrb[0].mxu0
        %761 = vdwg.mxu0
        %v762 = vmul.f32 %v759, 0.35355338
        %vm763 = vcmask 130048
        %v764 = vsel %vm763, %v762, -inf
        %765 = vmax.xlane.f32.xlu0 %v764
        %v766 = vpop.xlane.xlu0 %765
        %v767 = vsub.f32 %v762, %v766
        %v768 = vmul.f32 %v767, 1.442695
        %v769 = vpow.pop %v768
        %v770 = vsel %vm763, %v769, 0.0
        %771 = vadd.xlane.f32.xlu0 %v770
        %v772 = vpop.xlane.xlu0 %771
        %v773 = vrcp.pop %v772
        %v774 = vmul.f32 %v769, %v773
        %v776 = vsel %vm763, %v774, 0
        %778 = vmatprep.subr.mxu0 0.0
        %779 = vmatpush1.msra.mxu0 %v674
        %780 = vmatprep.subr.mxu0 0.0
        %781 = vmatpush1.msra.mxu0 %v679
        %782 = vmatprep.subr.mxu0 0.0
        %783 = vmatpush1.msra.mxu0 0.0
        %784 = vmatprep.subr.mxu0 0.0
        %785 = vmatpush1.msra.mxu0 0.0
        %786 = vmatprep.subr.mxu0 0.0
        %787 = vmatpush1.msra.mxu0 0.0
        %788 = vmatprep.subr.mxu0 0.0
        %789 = vmatpush1.msra.mxu0 0.0
        %790 = vmatprep.subr.mxu0 0.0
        %791 = vmatpush1.msra.mxu0 0.0
        %792 = vmatprep.subr.mxu0 0.0
        %793 = vmatpush1.msra.mxu0 0.0
        %794 = vmatprep.subr.mxu0 0.0
        %795 = vmatpush1.msra.mxu0 0.0
        %796 = vmatprep.subr.mxu0 0.0
        %797 = vmatpush1.msra.mxu0 0.0
        %798 = vmatprep.subr.mxu0 0.0
        %799 = vmatpush1.msra.mxu0 0.0
        %800 = vmatprep.subr.mxu0 0.0
        %801 = vmatpush1.msra.mxu0 0.0
        %802 = vmatprep.subr.mxu0 0.0
        %803 = vmatpush1.msra.mxu0 0.0
        %804 = vmatprep.subr.mxu0 0.0
        %805 = vmatpush1.msra.mxu0 0.0
        %806 = vmatprep.subr.mxu0 0.0
        %807 = vmatpush1.msra.mxu0 0.0
        %808 = vmatprep.subr.mxu0 0.0
        %809 = vmatpush1.msra.mxu0 0.0
        %810 = vmatprep.subr.mxu0 0.0
        %811 = vmatpush1.msra.mxu0 0.0
        %812 = vmatprep.subr.mxu0 0.0
        %813 = vmatpush1.msra.mxu0 0.0
        %814 = vmatprep.subr.mxu0 0.0
        %815 = vmatpush1.msra.mxu0 0.0
        %816 = vmatprep.subr.mxu0 0.0
        %817 = vmatpush1.msra.mxu0 0.0
        %818 = vmatprep.subr.mxu0 0.0
        %819 = vmatpush1.msra.mxu0 0.0
        %820 = vmatprep.subr.mxu0 0.0
        %821 = vmatpush1.msra.mxu0 0.0
        %822 = vmatprep.subr.mxu0 0.0
        %823 = vmatpush1.msra.mxu0 0.0
        %824 = vmatprep.subr.mxu0 0.0
        %825 = vmatpush1.msra.mxu0 0.0
        %826 = vmatprep.subr.mxu0 0.0
        %827 = vmatpush1.msra.mxu0 0.0
        %828 = vmatprep.subr.mxu0 0.0
        %829 = vmatpush1.msra.mxu0 0.0
        %830 = vmatprep.subr.mxu0 0.0
        %831 = vmatpush1.msra.mxu0 0.0
        %832 = vmatprep.subr.mxu0 0.0
        %833 = vmatpush1.msra.mxu0 0.0
        %834 = vmatprep.subr.mxu0 0.0
        %835 = vmatpush1.msra.mxu0 0.0
        %836 = vmatprep.subr.mxu0 0.0
        %837 = vmatpush1.msra.mxu0 0.0
        %838 = vmatprep.subr.mxu0 0.0
        %839 = vmatpush1.msra.mxu0 0.0
        %840 = vmatprep.subr.mxu0 0.0
        %841 = vmatpush1.msra.mxu0 0.0
        %842 = vmatprep.mubr.f32.mxu0 0.0
        %843 = vmatmul.mubr.f32.gmra.mrb[0].mxu0 %v776
        %v844 = vpop.f32.mrb[0].mxu0
        %v845 = vadd.f32 0.0, %v844
        %v846 = vpop.f32.mrb[0].mxu0
        %847 = vdwg.mxu0
        %848 = vst.msk [vmem:[#allocation2] sm:$0xff] %vm682, %v845
        %849 = vrot.lane.b32.xlu0 %v509, 120
        %v850 = vpop.permute.xlu0 %849
        %851 = vrot.lane.b32.xlu0 %v589, 120
        %v852 = vpop.permute.xlu0 %851
        %853 = vrot.lane.b32.xlu0 %v594, 120
        %v854 = vpop.permute.xlu0 %853
        %v855 = vsel %vm682, %v850, 0
        %v857 = vsel %vm682, %v852, 0
        %v859 = vsel %vm682, %v854, 0
        %861 = vmatprep.subr.mxu0 0.0
        %862 = vmatpush1.xpose.msra.mxu0 %v857
        %863 = vmatprep.subr.mxu0 0.0
        %864 = vmatpush1.xpose.msra.mxu0 %v859
        %865 = vmatprep.subr.mxu0 0.0
        %866 = vmatpush1.xpose.msra.mxu0 0.0
        %867 = vmatprep.subr.mxu0 0.0
        %868 = vmatpush1.xpose.msra.mxu0 0.0
        %869 = vmatprep.subr.mxu0 0.0
        %870 = vmatpush1.xpose.msra.mxu0 0.0
        %871 = vmatprep.subr.mxu0 0.0
        %872 = vmatpush1.xpose.msra.mxu0 0.0
        %873 = vmatprep.subr.mxu0 0.0
        %874 = vmatpush1.xpose.msra.mxu0 0.0
        %875 = vmatprep.subr.mxu0 0.0
        %876 = vmatpush1.xpose.msra.mxu0 0.0
        %877 = vmatprep.subr.mxu0 0.0
        %878 = vmatpush1.xpose.msra.mxu0 0.0
        %879 = vmatprep.subr.mxu0 0.0
        %880 = vmatpush1.xpose.msra.mxu0 0.0
        %881 = vmatprep.subr.mxu0 0.0
        %882 = vmatpush1.xpose.msra.mxu0 0.0
        %883 = vmatprep.subr.mxu0 0.0
        %884 = vmatpush1.xpose.msra.mxu0 0.0
        %885 = vmatprep.subr.mxu0 0.0
        %886 = vmatpush1.xpose.msra.mxu0 0.0
        %887 = vmatprep.subr.mxu0 0.0
        %888 = vmatpush1.xpose.msra.mxu0 0.0
        %889 = vmatprep.subr.mxu0 0.0
        %890 = vmatpush1.xpose.msra.mxu0 0.0
        %891 = vmatprep.subr.mxu0 0.0
        %892 = vmatpush1.xpose.msra.mxu0 0.0
        %893 = vmatprep.subr.mxu0 0.0
        %894 = vmatpush1.xpose.msra.mxu0 0.0
        %895 = vmatprep.subr.mxu0 0.0
        %896 = vmatpush1.xpose.msra.mxu0 0.0
        %897 = vmatprep.subr.mxu0 0.0
        %898 = vmatpush1.xpose.msra.mxu0 0.0
        %899 = vmatprep.subr.mxu0 0.0
        %900 = vmatpush1.xpose.msra.mxu0 0.0
        %901 = vmatprep.subr.mxu0 0.0
        %902 = vmatpush1.xpose.msra.mxu0 0.0
        %903 = vmatprep.subr.mxu0 0.0
        %904 = vmatpush1.xpose.msra.mxu0 0.0
        %905 = vmatprep.subr.mxu0 0.0
        %906 = vmatpush1.xpose.msra.mxu0 0.0
        %907 = vmatprep.subr.mxu0 0.0
        %908 = vmatpush1.xpose.msra.mxu0 0.0
        %909 = vmatprep.subr.mxu0 0.0
        %910 = vmatpush1.xpose.msra.mxu0 0.0
        %911 = vmatprep.subr.mxu0 0.0
        %912 = vmatpush1.xpose.msra.mxu0 0.0
        %913 = vmatprep.subr.mxu0 0.0
        %914 = vmatpush1.xpose.msra.mxu0 0.0
        %915 = vmatprep.subr.mxu0 0.0
        %916 = vmatpush1.xpose.msra.mxu0 0.0
        %917 = vmatprep.subr.mxu0 0.0
        %918 = vmatpush1.xpose.msra.mxu0 0.0
        %919 = vmatprep.subr.mxu0 0.0
        %920 = vmatpush1.xpose.msra.mxu0 0.0
        %921 = vmatprep.subr.mxu0 0.0
        %922 = vmatpush1.xpose.msra.mxu0 0.0
        %923 = vmatprep.subr.mxu0 0.0
        %924 = vmatpush1.xpose.msra.mxu0 0.0
        %925 = vmatprep.mubr.f32.mxu0 0.0
        %926 = vmatmul.mubr.f32.gmra.mrb[0].mxu0 %v855
        %v927 = vpop.f32.mrb[0].mxu0
        %v928 = vadd.f32 0.0, %v927
        %v929 = vpop.f32.mrb[0].mxu0
        %930 = vdwg.mxu0
        %v931 = vmul.f32 %v928, 0.35355338
        %v932 = vsel %vm763, %v931, -inf
        %933 = vmax.xlane.f32.xlu0 %v932
        %v934 = vpop.xlane.xlu0 %933
        %v935 = vsub.f32 %v931, %v934
        %v936 = vmul.f32 %v935, 1.442695
        %v937 = vpow.pop %v936
        %v938 = vsel %vm763, %v937, 0.0
        %939 = vadd.xlane.f32.xlu0 %v938
        %v940 = vpop.xlane.xlu0 %939
        %v941 = vrcp.pop %v940
        %v942 = vmul.f32 %v937, %v941
        %945 = vrot.lane.b32.xlu0 %v674, 120
        %v946 = vpop.permute.xlu0 %945
        %947 = vrot.lane.b32.xlu0 %v679, 120
        %v948 = vpop.permute.xlu0 %947
        %v952 = vsel %vm763, %v942, 0
        %954 = vmatprep.subr.mxu0 0.0
        %955 = vmatpush1.msra.mxu0 %v946
        %956 = vmatprep.subr.mxu0 0.0
        %957 = vmatpush1.msra.mxu0 %v948
        %958 = vmatprep.subr.mxu0 0.0
        %959 = vmatpush1.msra.mxu0 0.0
        %960 = vmatprep.subr.mxu0 0.0
        %961 = vmatpush1.msra.mxu0 0.0
        %962 = vmatprep.subr.mxu0 0.0
        %963 = vmatpush1.msra.mxu0 0.0
        %964 = vmatprep.subr.mxu0 0.0
        %965 = vmatpush1.msra.mxu0 0.0
        %966 = vmatprep.subr.mxu0 0.0
        %967 = vmatpush1.msra.mxu0 0.0
        %968 = vmatprep.subr.mxu0 0.0
        %969 = vmatpush1.msra.mxu0 0.0
        %970 = vmatprep.subr.mxu0 0.0
        %971 = vmatpush1.msra.mxu0 0.0
        %972 = vmatprep.subr.mxu0 0.0
        %973 = vmatpush1.msra.mxu0 0.0
        %974 = vmatprep.subr.mxu0 0.0
        %975 = vmatpush1.msra.mxu0 0.0
        %976 = vmatprep.subr.mxu0 0.0
        %977 = vmatpush1.msra.mxu0 0.0
        %978 = vmatprep.subr.mxu0 0.0
        %979 = vmatpush1.msra.mxu0 0.0
        %980 = vmatprep.subr.mxu0 0.0
        %981 = vmatpush1.msra.mxu0 0.0
        %982 = vmatprep.subr.mxu0 0.0
        %983 = vmatpush1.msra.mxu0 0.0
        %984 = vmatprep.subr.mxu0 0.0
        %985 = vmatpush1.msra.mxu0 0.0
        %986 = vmatprep.subr.mxu0 0.0
        %987 = vmatpush1.msra.mxu0 0.0
        %988 = vmatprep.subr.mxu0 0.0
        %989 = vmatpush1.msra.mxu0 0.0
        %990 = vmatprep.subr.mxu0 0.0
        %991 = vmatpush1.msra.mxu0 0.0
        %992 = vmatprep.subr.mxu0 0.0
        %993 = vmatpush1.msra.mxu0 0.0
        %994 = vmatprep.subr.mxu0 0.0
        %995 = vmatpush1.msra.mxu0 0.0
        %996 = vmatprep.subr.mxu0 0.0
        %997 = vmatpush1.msra.mxu0 0.0
        %998 = vmatprep.subr.mxu0 0.0
        %999 = vmatpush1.msra.mxu0 0.0
        %1000 = vmatprep.subr.mxu0 0.0
        %1001 = vmatpush1.msra.mxu0 0.0
        %1002 = vmatprep.subr.mxu0 0.0
        %1003 = vmatpush1.msra.mxu0 0.0
        %1004 = vmatprep.subr.mxu0 0.0
        %1005 = vmatpush1.msra.mxu0 0.0
        %1006 = vmatprep.subr.mxu0 0.0
        %1007 = vmatpush1.msra.mxu0 0.0
        %1008 = vmatprep.subr.mxu0 0.0
        %1009 = vmatpush1.msra.mxu0 0.0
        %1010 = vmatprep.subr.mxu0 0.0
        %1011 = vmatpush1.msra.mxu0 0.0
        %1012 = vmatprep.subr.mxu0 0.0
        %1013 = vmatpush1.msra.mxu0 0.0
        %1014 = vmatprep.subr.mxu0 0.0
        %1015 = vmatpush1.msra.mxu0 0.0
        %1016 = vmatprep.subr.mxu0 0.0
        %1017 = vmatpush1.msra.mxu0 0.0
        %1018 = vmatprep.mubr.f32.mxu0 0.0
        %1019 = vmatmul.mubr.f32.gmra.mrb[0].mxu0 %v952
        %v1020 = vpop.f32.mrb[0].mxu0
        %v1021 = vadd.f32 0.0, %v1020
        %v1022 = vpop.f32.mrb[0].mxu0
        %1023 = vdwg.mxu0
        %1025 = vrot.lane.b32.xlu0 %v1021, 8
        %v1026 = vpop.permute.xlu0 %1025
        %vm1028 = vcmask 130112
        %1029 = vst.msk [vmem:[#allocation2] sm:$0xff] %vm1028, %v1026
        %1030 = vrot.lane.b32.xlu0 %v509, 112
        %v1031 = vpop.permute.xlu0 %1030
        %1032 = vrot.lane.b32.xlu0 %v589, 112
        %v1033 = vpop.permute.xlu0 %1032
        %1034 = vrot.lane.b32.xlu0 %v594, 112
        %v1035 = vpop.permute.xlu0 %1034
        %v1036 = vsel %vm682, %v1031, 0
        %v1038 = vsel %vm682, %v1033, 0
        %v1040 = vsel %vm682, %v1035, 0
        %1042 = vmatprep.subr.mxu0 0.0
        %1043 = vmatpush1.xpose.msra.mxu0 %v1038
        %1044 = vmatprep.subr.mxu0 0.0
        %1045 = vmatpush1.xpose.msra.mxu0 %v1040
        %1046 = vmatprep.subr.mxu0 0.0
        %1047 = vmatpush1.xpose.msra.mxu0 0.0
        %1048 = vmatprep.subr.mxu0 0.0
        %1049 = vmatpush1.xpose.msra.mxu0 0.0
        %1050 = vmatprep.subr.mxu0 0.0
        %1051 = vmatpush1.xpose.msra.mxu0 0.0
        %1052 = vmatprep.subr.mxu0 0.0
        %1053 = vmatpush1.xpose.msra.mxu0 0.0
        %1054 = vmatprep.subr.mxu0 0.0
        %1055 = vmatpush1.xpose.msra.mxu0 0.0
        %1056 = vmatprep.subr.mxu0 0.0
        %1057 = vmatpush1.xpose.msra.mxu0 0.0
        %1058 = vmatprep.subr.mxu0 0.0
        %1059 = vmatpush1.xpose.msra.mxu0 0.0
        %1060 = vmatprep.subr.mxu0 0.0
        %1061 = vmatpush1.xpose.msra.mxu0 0.0
        %1062 = vmatprep.subr.mxu0 0.0
        %1063 = vmatpush1.xpose.msra.mxu0 0.0
        %1064 = vmatprep.subr.mxu0 0.0
        %1065 = vmatpush1.xpose.msra.mxu0 0.0
        %1066 = vmatprep.subr.mxu0 0.0
        %1067 = vmatpush1.xpose.msra.mxu0 0.0
        %1068 = vmatprep.subr.mxu0 0.0
        %1069 = vmatpush1.xpose.msra.mxu0 0.0
        %1070 = vmatprep.subr.mxu0 0.0
        %1071 = vmatpush1.xpose.msra.mxu0 0.0
        %1072 = vmatprep.subr.mxu0 0.0
        %1073 = vmatpush1.xpose.msra.mxu0 0.0
        %1074 = vmatprep.subr.mxu0 0.0
        %1075 = vmatpush1.xpose.msra.mxu0 0.0
        %1076 = vmatprep.subr.mxu0 0.0
        %1077 = vmatpush1.xpose.msra.mxu0 0.0
        %1078 = vmatprep.subr.mxu0 0.0
        %1079 = vmatpush1.xpose.msra.mxu0 0.0
        %1080 = vmatprep.subr.mxu0 0.0
        %1081 = vmatpush1.xpose.msra.mxu0 0.0
        %1082 = vmatprep.subr.mxu0 0.0
        %1083 = vmatpush1.xpose.msra.mxu0 0.0
        %1084 = vmatprep.subr.mxu0 0.0
        %1085 = vmatpush1.xpose.msra.mxu0 0.0
        %1086 = vmatprep.subr.mxu0 0.0
        %1087 = vmatpush1.xpose.msra.mxu0 0.0
        %1088 = vmatprep.subr.mxu0 0.0
        %1089 = vmatpush1.xpose.msra.mxu0 0.0
        %1090 = vmatprep.subr.mxu0 0.0
        %1091 = vmatpush1.xpose.msra.mxu0 0.0
        %1092 = vmatprep.subr.mxu0 0.0
        %1093 = vmatpush1.xpose.msra.mxu0 0.0
        %1094 = vmatprep.subr.mxu0 0.0
        %1095 = vmatpush1.xpose.msra.mxu0 0.0
        %1096 = vmatprep.subr.mxu0 0.0
        %1097 = vmatpush1.xpose.msra.mxu0 0.0
        %1098 = vmatprep.subr.mxu0 0.0
        %1099 = vmatpush1.xpose.msra.mxu0 0.0
        %1100 = vmatprep.subr.mxu0 0.0
        %1101 = vmatpush1.xpose.msra.mxu0 0.0
        %1102 = vmatprep.subr.mxu0 0.0
        %1103 = vmatpush1.xpose.msra.mxu0 0.0
        %1104 = vmatprep.subr.mxu0 0.0
        %1105 = vmatpush1.xpose.msra.mxu0 0.0
        %1106 = vmatprep.mubr.f32.mxu0 0.0
        %1107 = vmatmul.mubr.f32.gmra.mrb[0].mxu0 %v1036
        %v1108 = vpop.f32.mrb[0].mxu0
        %v1109 = vadd.f32 0.0, %v1108
        %v1110 = vpop.f32.mrb[0].mxu0
        %1111 = vdwg.mxu0
        %v1112 = vmul.f32 %v1109, 0.35355338
        %v1113 = vsel %vm763, %v1112, -inf
        %1114 = vmax.xlane.f32.xlu0 %v1113
        %v1115 = vpop.xlane.xlu0 %1114
        %v1116 = vsub.f32 %v1112, %v1115
        %v1117 = vmul.f32 %v1116, 1.442695
        %v1118 = vpow.pop %v1117
        %v1119 = vsel %vm763, %v1118, 0.0
        %1120 = vadd.xlane.f32.xlu0 %v1119
        %v1121 = vpop.xlane.xlu0 %1120
        %v1122 = vrcp.pop %v1121
        %v1123 = vmul.f32 %v1118, %v1122
        %1124 = vrot.lane.b32.xlu0 %v674, 112
        %v1125 = vpop.permute.xlu0 %1124
        %1126 = vrot.lane.b32.xlu0 %v679, 112
        %v1127 = vpop.permute.xlu0 %1126
        %v1131 = vsel %vm763, %v1123, 0
        %1133 = vmatprep.subr.mxu0 0.0
        %1134 = vmatpush1.msra.mxu0 %v1125
        %1135 = vmatprep.subr.mxu0 0.0
        %1136 = vmatpush1.msra.mxu0 %v1127
        %1137 = vmatprep.subr.mxu0 0.0
        %1138 = vmatpush1.msra.mxu0 0.0
        %1139 = vmatprep.subr.mxu0 0.0
        %1140 = vmatpush1.msra.mxu0 0.0
        %1141 = vmatprep.subr.mxu0 0.0
        %1142 = vmatpush1.msra.mxu0 0.0
        %1143 = vmatprep.subr.mxu0 0.0
        %1144 = vmatpush1.msra.mxu0 0.0
        %1145 = vmatprep.subr.mxu0 0.0
        %1146 = vmatpush1.msra.mxu0 0.0
        %1147 = vmatprep.subr.mxu0 0.0
        %1148 = vmatpush1.msra.mxu0 0.0
        %1149 = vmatprep.subr.mxu0 0.0
        %1150 = vmatpush1.msra.mxu0 0.0
        %1151 = vmatprep.subr.mxu0 0.0
        %1152 = vmatpush1.msra.mxu0 0.0
        %1153 = vmatprep.subr.mxu0 0.0
        %1154 = vmatpush1.msra.mxu0 0.0
        %1155 = vmatprep.subr.mxu0 0.0
        %1156 = vmatpush1.msra.mxu0 0.0
        %1157 = vmatprep.subr.mxu0 0.0
        %1158 = vmatpush1.msra.mxu0 0.0
        %1159 = vmatprep.subr.mxu0 0.0
        %1160 = vmatpush1.msra.mxu0 0.0
        %1161 = vmatprep.subr.mxu0 0.0
        %1162 = vmatpush1.msra.mxu0 0.0
        %1163 = vmatprep.subr.mxu0 0.0
        %1164 = vmatpush1.msra.mxu0 0.0
        %1165 = vmatprep.subr.mxu0 0.0
        %1166 = vmatpush1.msra.mxu0 0.0
        %1167 = vmatprep.subr.mxu0 0.0
        %1168 = vmatpush1.msra.mxu0 0.0
        %1169 = vmatprep.subr.mxu0 0.0
        %1170 = vmatpush1.msra.mxu0 0.0
        %1171 = vmatprep.subr.mxu0 0.0
        %1172 = vmatpush1.msra.mxu0 0.0
        %1173 = vmatprep.subr.mxu0 0.0
        %1174 = vmatpush1.msra.mxu0 0.0
        %1175 = vmatprep.subr.mxu0 0.0
        %1176 = vmatpush1.msra.mxu0 0.0
        %1177 = vmatprep.subr.mxu0 0.0
        %1178 = vmatpush1.msra.mxu0 0.0
        %1179 = vmatprep.subr.mxu0 0.0
        %1180 = vmatpush1.msra.mxu0 0.0
        %1181 = vmatprep.subr.mxu0 0.0
        %1182 = vmatpush1.msra.mxu0 0.0
        %1183 = vmatprep.subr.mxu0 0.0
        %1184 = vmatpush1.msra.mxu0 0.0
        %1185 = vmatprep.subr.mxu0 0.0
        %1186 = vmatpush1.msra.mxu0 0.0
        %1187 = vmatprep.subr.mxu0 0.0
        %1188 = vmatpush1.msra.mxu0 0.0
        %1189 = vmatprep.subr.mxu0 0.0
        %1190 = vmatpush1.msra.mxu0 0.0
        %1191 = vmatprep.subr.mxu0 0.0
        %1192 = vmatpush1.msra.mxu0 0.0
        %1193 = vmatprep.subr.mxu0 0.0
        %1194 = vmatpush1.msra.mxu0 0.0
        %1195 = vmatprep.subr.mxu0 0.0
        %1196 = vmatpush1.msra.mxu0 0.0
        %1197 = vmatprep.mubr.f32.mxu0 0.0
        %1198 = vmatmul.mubr.f32.gmra.mrb[0].mxu0 %v1131
        %v1199 = vpop.f32.mrb[0].mxu0
        %v1200 = vadd.f32 0.0, %v1199
        %v1201 = vpop.f32.mrb[0].mxu0
        %1202 = vdwg.mxu0
        %1204 = vrot.lane.b32.xlu0 %v1200, 16
        %v1205 = vpop.permute.xlu0 %1204
        %vm1207 = vcmask 195712
        %1208 = vst.msk [vmem:[#allocation2] sm:$0xff] %vm1207, %v1205
        %1209 = vrot.lane.b32.xlu0 %v509, 104
        %v1210 = vpop.permute.xlu0 %1209
        %1211 = vrot.lane.b32.xlu0 %v589, 104
        %v1212 = vpop.permute.xlu0 %1211
        %1213 = vrot.lane.b32.xlu0 %v594, 104
        %v1214 = vpop.permute.xlu0 %1213
        %v1215 = vsel %vm682, %v1210, 0
        %v1217 = vsel %vm682, %v1212, 0
        %v1219 = vsel %vm682, %v1214, 0
        %1221 = vmatprep.subr.mxu0 0.0
        %1222 = vmatpush1.xpose.msra.mxu0 %v1217
        %1223 = vmatprep.subr.mxu0 0.0
        %1224 = vmatpush1.xpose.msra.mxu0 %v1219
        %1225 = vmatprep.subr.mxu0 0.0
        %1226 = vmatpush1.xpose.msra.mxu0 0.0
        %1227 = vmatprep.subr.mxu0 0.0
        %1228 = vmatpush1.xpose.msra.mxu0 0.0
        %1229 = vmatprep.subr.mxu0 0.0
        %1230 = vmatpush1.xpose.msra.mxu0 0.0
        %1231 = vmatprep.subr.mxu0 0.0
        %1232 = vmatpush1.xpose.msra.mxu0 0.0
        %1233 = vmatprep.subr.mxu0 0.0
        %1234 = vmatpush1.xpose.msra.mxu0 0.0
        %1235 = vmatprep.subr.mxu0 0.0
        %1236 = vmatpush1.xpose.msra.mxu0 0.0
        %1237 = vmatprep.subr.mxu0 0.0
        %1238 = vmatpush1.xpose.msra.mxu0 0.0
        %1239 = vmatprep.subr.mxu0 0.0
        %1240 = vmatpush1.xpose.msra.mxu0 0.0
        %1241 = vmatprep.subr.mxu0 0.0
        %1242 = vmatpush1.xpose.msra.mxu0 0.0
        %1243 = vmatprep.subr.mxu0 0.0
        %1244 = vmatpush1.xpose.msra.mxu0 0.0
        %1245 = vmatprep.subr.mxu0 0.0
        %1246 = vmatpush1.xpose.msra.mxu0 0.0
        %1247 = vmatprep.subr.mxu0 0.0
        %1248 = vmatpush1.xpose.msra.mxu0 0.0
        %1249 = vmatprep.subr.mxu0 0.0
        %1250 = vmatpush1.xpose.msra.mxu0 0.0
        %1251 = vmatprep.subr.mxu0 0.0
        %1252 = vmatpush1.xpose.msra.mxu0 0.0
        %1253 = vmatprep.subr.mxu0 0.0
        %1254 = vmatpush1.xpose.msra.mxu0 0.0
        %1255 = vmatprep.subr.mxu0 0.0
        %1256 = vmatpush1.xpose.msra.mxu0 0.0
        %1257 = vmatprep.subr.mxu0 0.0
        %1258 = vmatpush1.xpose.msra.mxu0 0.0
        %1259 = vmatprep.subr.mxu0 0.0
        %1260 = vmatpush1.xpose.msra.mxu0 0.0
        %1261 = vmatprep.subr.mxu0 0.0
        %1262 = vmatpush1.xpose.msra.mxu0 0.0
        %1263 = vmatprep.subr.mxu0 0.0
        %1264 = vmatpush1.xpose.msra.mxu0 0.0
        %1265 = vmatprep.subr.mxu0 0.0
        %1266 = vmatpush1.xpose.msra.mxu0 0.0
        %1267 = vmatprep.subr.mxu0 0.0
        %1268 = vmatpush1.xpose.msra.mxu0 0.0
        %1269 = vmatprep.subr.mxu0 0.0
        %1270 = vmatpush1.xpose.msra.mxu0 0.0
        %1271 = vmatprep.subr.mxu0 0.0
        %1272 = vmatpush1.xpose.msra.mxu0 0.0
        %1273 = vmatprep.subr.mxu0 0.0
        %1274 = vmatpush1.xpose.msra.mxu0 0.0
        %1275 = vmatprep.subr.mxu0 0.0
        %1276 = vmatpush1.xpose.msra.mxu0 0.0
        %1277 = vmatprep.subr.mxu0 0.0
        %1278 = vmatpush1.xpose.msra.mxu0 0.0
        %1279 = vmatprep.subr.mxu0 0.0
        %1280 = vmatpush1.xpose.msra.mxu0 0.0
        %1281 = vmatprep.subr.mxu0 0.0
        %1282 = vmatpush1.xpose.msra.mxu0 0.0
        %1283 = vmatprep.subr.mxu0 0.0
        %1284 = vmatpush1.xpose.msra.mxu0 0.0
        %1285 = vmatprep.mubr.f32.mxu0 0.0
        %1286 = vmatmul.mubr.f32.gmra.mrb[0].mxu0 %v1215
        %v1287 = vpop.f32.mrb[0].mxu0
        %v1288 = vadd.f32 0.0, %v1287
        %v1289 = vpop.f32.mrb[0].mxu0
        %1290 = vdwg.mxu0
        %v1291 = vmul.f32 %v1288, 0.35355338
        %v1292 = vsel %vm763, %v1291, -inf
        %1293 = vmax.xlane.f32.xlu0 %v1292
        %v1294 = vpop.xlane.xlu0 %1293
        %v1295 = vsub.f32 %v1291, %v1294
        %v1296 = vmul.f32 %v1295, 1.442695
        %v1297 = vpow.pop %v1296
        %v1298 = vsel %vm763, %v1297, 0.0
        %1299 = vadd.xlane.f32.xlu0 %v1298
        %v1300 = vpop.xlane.xlu0 %1299
        %v1301 = vrcp.pop %v1300
        %v1302 = vmul.f32 %v1297, %v1301
        %1303 = vrot.lane.b32.xlu0 %v674, 104
        %v1304 = vpop.permute.xlu0 %1303
        %1305 = vrot.lane.b32.xlu0 %v679, 104
        %v1306 = vpop.permute.xlu0 %1305
        %v1310 = vsel %vm763, %v1302, 0
        %1312 = vmatprep.subr.mxu0 0.0
        %1313 = vmatpush1.msra.mxu0 %v1304
        %1314 = vmatprep.subr.mxu0 0.0
        %1315 = vmatpush1.msra.mxu0 %v1306
        %1316 = vmatprep.subr.mxu0 0.0
        %1317 = vmatpush1.msra.mxu0 0.0
        %1318 = vmatprep.subr.mxu0 0.0
        %1319 = vmatpush1.msra.mxu0 0.0
        %1320 = vmatprep.subr.mxu0 0.0
        %1321 = vmatpush1.msra.mxu0 0.0
        %1322 = vmatprep.subr.mxu0 0.0
        %1323 = vmatpush1.msra.mxu0 0.0
        %1324 = vmatprep.subr.mxu0 0.0
        %1325 = vmatpush1.msra.mxu0 0.0
        %1326 = vmatprep.subr.mxu0 0.0
        %1327 = vmatpush1.msra.mxu0 0.0
        %1328 = vmatprep.subr.mxu0 0.0
        %1329 = vmatpush1.msra.mxu0 0.0
        %1330 = vmatprep.subr.mxu0 0.0
        %1331 = vmatpush1.msra.mxu0 0.0
        %1332 = vmatprep.subr.mxu0 0.0
        %1333 = vmatpush1.msra.mxu0 0.0
        %1334 = vmatprep.subr.mxu0 0.0
        %1335 = vmatpush1.msra.mxu0 0.0
        %1336 = vmatprep.subr.mxu0 0.0
        %1337 = vmatpush1.msra.mxu0 0.0
        %1338 = vmatprep.subr.mxu0 0.0
        %1339 = vmatpush1.msra.mxu0 0.0
        %1340 = vmatprep.subr.mxu0 0.0
        %1341 = vmatpush1.msra.mxu0 0.0
        %1342 = vmatprep.subr.mxu0 0.0
        %1343 = vmatpush1.msra.mxu0 0.0
        %1344 = vmatprep.subr.mxu0 0.0
        %1345 = vmatpush1.msra.mxu0 0.0
        %1346 = vmatprep.subr.mxu0 0.0
        %1347 = vmatpush1.msra.mxu0 0.0
        %1348 = vmatprep.subr.mxu0 0.0
        %1349 = vmatpush1.msra.mxu0 0.0
        %1350 = vmatprep.subr.mxu0 0.0
        %1351 = vmatpush1.msra.mxu0 0.0
        %1352 = vmatprep.subr.mxu0 0.0
        %1353 = vmatpush1.msra.mxu0 0.0
        %1354 = vmatprep.subr.mxu0 0.0
        %1355 = vmatpush1.msra.mxu0 0.0
        %1356 = vmatprep.subr.mxu0 0.0
        %1357 = vmatpush1.msra.mxu0 0.0
        %1358 = vmatprep.subr.mxu0 0.0
        %1359 = vmatpush1.msra.mxu0 0.0
        %1360 = vmatprep.subr.mxu0 0.0
        %1361 = vmatpush1.msra.mxu0 0.0
        %1362 = vmatprep.subr.mxu0 0.0
        %1363 = vmatpush1.msra.mxu0 0.0
        %1364 = vmatprep.subr.mxu0 0.0
        %1365 = vmatpush1.msra.mxu0 0.0
        %1366 = vmatprep.subr.mxu0 0.0
        %1367 = vmatpush1.msra.mxu0 0.0
        %1368 = vmatprep.subr.mxu0 0.0
        %1369 = vmatpush1.msra.mxu0 0.0
        %1370 = vmatprep.subr.mxu0 0.0
        %1371 = vmatpush1.msra.mxu0 0.0
        %1372 = vmatprep.subr.mxu0 0.0
        %1373 = vmatpush1.msra.mxu0 0.0
        %1374 = vmatprep.subr.mxu0 0.0
        %1375 = vmatpush1.msra.mxu0 0.0
        %1376 = vmatprep.mubr.f32.mxu0 0.0
        %1377 = vmatmul.mubr.f32.gmra.mrb[0].mxu0 %v1310
        %v1378 = vpop.f32.mrb[0].mxu0
        %v1379 = vadd.f32 0.0, %v1378
        %v1380 = vpop.f32.mrb[0].mxu0
        %1381 = vdwg.mxu0
        %1383 = vrot.lane.b32.xlu0 %v1379, 24
        %v1384 = vpop.permute.xlu0 %1383
        %vm1386 = vcmask 261312
        %1387 = vst.msk [vmem:[#allocation2] sm:$0xff] %vm1386, %v1384
        %v1388 = vld [vmem:[#allocation2] sm:$0xff]
        %v1389 = vld [vmem:[#allocation14] sm:$0xff]
        %v1390 = vld [vmem:[#allocation14 + $0x8] sm:$0xff]
        %v1391 = vld [vmem:[#allocation14 + $0x10] sm:$0xff]
        %v1392 = vld [vmem:[#allocation14 + $0x18] sm:$0xff]
        %v1394 = vsel %vm438, %v1388, 0
        %1396 = vmatprep.subr.mxu0 0.0
        %1397 = vmatpush1.msra.mxu0 %v1389
        %1398 = vmatprep.subr.mxu0 0.0
        %1399 = vmatpush1.msra.mxu0 %v1390
        %1400 = vmatprep.subr.mxu0 0.0
        %1401 = vmatpush1.msra.mxu0 %v1391
        %1402 = vmatprep.subr.mxu0 0.0
        %1403 = vmatpush1.msra.mxu0 %v1392
        %1404 = vmatprep.subr.mxu0 0.0
        %1405 = vmatpush1.msra.mxu0 0.0
        %1406 = vmatprep.subr.mxu0 0.0
        %1407 = vmatpush1.msra.mxu0 0.0
        %1408 = vmatprep.subr.mxu0 0.0
        %1409 = vmatpush1.msra.mxu0 0.0
        %1410 = vmatprep.subr.mxu0 0.0
        %1411 = vmatpush1.msra.mxu0 0.0
        %1412 = vmatprep.subr.mxu0 0.0
        %1413 = vmatpush1.msra.mxu0 0.0
        %1414 = vmatprep.subr.mxu0 0.0
        %1415 = vmatpush1.msra.mxu0 0.0
        %1416 = vmatprep.subr.mxu0 0.0
        %1417 = vmatpush1.msra.mxu0 0.0
        %1418 = vmatprep.subr.mxu0 0.0
        %1419 = vmatpush1.msra.mxu0 0.0
        %1420 = vmatprep.subr.mxu0 0.0
        %1421 = vmatpush1.msra.mxu0 0.0
        %1422 = vmatprep.subr.mxu0 0.0
        %1423 = vmatpush1.msra.mxu0 0.0
        %1424 = vmatprep.subr.mxu0 0.0
        %1425 = vmatpush1.msra.mxu0 0.0
        %1426 = vmatprep.subr.mxu0 0.0
        %1427 = vmatpush1.msra.mxu0 0.0
        %1428 = vmatprep.subr.mxu0 0.0
        %1429 = vmatpush1.msra.mxu0 0.0
        %1430 = vmatprep.subr.mxu0 0.0
        %1431 = vmatpush1.msra.mxu0 0.0
        %1432 = vmatprep.subr.mxu0 0.0
        %1433 = vmatpush1.msra.mxu0 0.0
        %1434 = vmatprep.subr.mxu0 0.0
        %1435 = vmatpush1.msra.mxu0 0.0
        %1436 = vmatprep.subr.mxu0 0.0
        %1437 = vmatpush1.msra.mxu0 0.0
        %1438 = vmatprep.subr.mxu0 0.0
        %1439 = vmatpush1.msra.mxu0 0.0
        %1440 = vmatprep.subr.mxu0 0.0
        %1441 = vmatpush1.msra.mxu0 0.0
        %1442 = vmatprep.subr.mxu0 0.0
        %1443 = vmatpush1.msra.mxu0 0.0
        %1444 = vmatprep.subr.mxu0 0.0
        %1445 = vmatpush1.msra.mxu0 0.0
        %1446 = vmatprep.subr.mxu0 0.0
        %1447 = vmatpush1.msra.mxu0 0.0
        %1448 = vmatprep.subr.mxu0 0.0
        %1449 = vmatpush1.msra.mxu0 0.0
        %1450 = vmatprep.subr.mxu0 0.0
        %1451 = vmatpush1.msra.mxu0 0.0
        %1452 = vmatprep.subr.mxu0 0.0
        %1453 = vmatpush1.msra.mxu0 0.0
        %1454 = vmatprep.subr.mxu0 0.0
        %1455 = vmatpush1.msra.mxu0 0.0
        %1456 = vmatprep.subr.mxu0 0.0
        %1457 = vmatpush1.msra.mxu0 0.0
        %1458 = vmatprep.subr.mxu0 0.0
        %1459 = vmatpush1.msra.mxu0 0.0
        %1460 = vmatprep.mubr.f32.mxu0 0.0
        %1461 = vmatmul.mubr.f32.gmra.mrb[0].mxu0 %v1394
        %v1462 = vpop.f32.mrb[0].mxu0
        %v1463 = vadd.f32 0.0, %v1462
        %v1464 = vpop.f32.mrb[0].mxu0
        %1465 = vdwg.mxu0
        %1466 = vst.msk [vmem:[%s428] sm:$0xff] %vm438, %v1463
        %s1467 = sand.u32 %s199, 1
        %s1468 = scalar_lea.sflag [#allocation5], %s1467
        %s1469 = sand.u32 %s199, 1
        %s1470 = smul.addr %s1469, 8
        %s1471 = scalar_lea.vmem [#allocation15], %s1470
        // Predicated region
        $region77: #{mha_forward.1} parent=47 // pred_check
          %p1472 = pneg %p209
        $region78: #{mha_forward.1} parent=47 // pred_check_branch
          %1474 = sbr.rel (%p1472) target = $region80
        $region79: #{mha_forward.1} parent=47 // pred_region
          %s1476 = ssub.s32 128, 128
          %1477 = vsyncadd %s1468, %s1476
          %s1478 = smul.addr %s29, 128
          %s1479 = scalar_lea.hbm %s7, %s1478
          %s1481 = sshll.u32 %s1471, 4
          %s1482 = int_to_ptr.vmem [resolvable:$true] %s1481
          %1484 = dma.vmem_to_hbm [thread:$0]  %s1482, 128, %s1479, %s1468
        $region80: #{mha_forward.1} parent=47 // pred_fallthru
          _
      $region48: #{mha_forward.1} parent=5 // pred_fallthru
        _
      %p1485 = scmp.le.s32.totalorder 2, %s24
      // Predicated region
      $region81: #{mha_forward.1} parent=5 // pred_check
        %p1486 = pneg %p1485
      $region82: #{mha_forward.1} parent=5 // pred_check_branch
        %1488 = sbr.rel (%p1486) target = $region84
      $region83: #{mha_forward.1} parent=5 // pred_region
        %s1489 = ssub.s32 %s24, 2
        // Predicated region
        $region85: #{mha_forward.1} parent=83 // pred_check
          %p1490 = pneg %p215
        $region86: #{mha_forward.1} parent=83 // pred_check_branch
          %1492 = sbr.rel (%p1490) target = $region88
        $region87: #{mha_forward.1} parent=83 // pred_region
          %s1493 = sand.u32 %s200, 1
          %s1494 = scalar_lea.sflag [#allocation5], %s1493
          %s1495 = sand.u32 %s200, 1
          %s1496 = smul.addr %s1495, 8
          %s1497 = scalar_lea.vmem [#allocation15], %s1496
          %1498 = dma.done %s1494, 128
        $region88: #{mha_forward.1} parent=83 // pred_fallthru
          _
      $region84: #{mha_forward.1} parent=5 // pred_fallthru
        _
    $region6: #{mha_forward.1} parent=1 // loop_footer
      %s28 = sadd.s32 1, %s24
    $region7: #{mha_forward.1} parent=1 // loop_footer_branch
      %23 = sbr.rel target = $region3
    $region8: #{mha_forward.1} parent=1 // loop_exit
      _
    %1499 = vsyncpa [#allocation4], 1
    %s1500 = scalar_lea.sflag [#allocation4], 1
    %1501 = vsyncpa %s1500, 1
    %1502 = vsyncpa [#allocation7], 1
    %s1503 = scalar_lea.sflag [#allocation7], 1
    %1504 = vsyncpa %s1503, 1
    %1505 = vsyncpa [#allocation10], 1
    %1506 = vsyncpa [#allocation13], 1
    %1507 = vsyncpa [#allocation5], 1
    %s1508 = scalar_lea.sflag [#allocation5], 1
    %1509 = vsyncpa %s1508, 1

</llo_original>
